<compile_context>
chip_gen: v7x
topology: tpu7x:2x2x1
jax: 0.10.0
libtpu: 0.0.40
codegen_flags: <defaults>
</compile_context>

<pallas_src>
import math

import jax
import jax.numpy as jnp
from jax.experimental import pallas as pl
from jax.experimental.pallas import tpu as pltpu

EPS = 1e-5


def _deconv_pad(k: int, s: int):
    # Same as the PyTorch helper `deconv_padding` for a single dim.
    return (math.ceil((k - s) / 2), (k - s) % 2)


# ----------------------------- Pallas kernels -----------------------------

def _deconv_bn_glu_kernel(w_ref, p_ref, gamma_ref, beta_ref, o_ref):
    """Fused ConvTranspose-matmul + BatchNorm (batch stats, two-pass) + GLU.

    w_ref:     (C2, K)   transposed, spatially-flipped deconv weight
    p_ref:     (K,  M)   transposed im2col patches, M = N*Hout*Wout (lane axis)
    gamma/beta:(C2, 1)
    o_ref:     (C2//2, M)
    """
    z = jnp.dot(w_ref[...], p_ref[...], preferred_element_type=jnp.float32)  # (C2, M)
    m = z.shape[1]
    inv_m = 1.0 / m
    mean = jnp.sum(z, axis=1, keepdims=True) * inv_m                 # (C2, 1)
    d = z - mean
    var = jnp.sum(d * d, axis=1, keepdims=True) * inv_m              # biased var (BN train mode)
    scale = gamma_ref[...] * jax.lax.rsqrt(var + EPS)                # EUP
    zn = d * scale + beta_ref[...]
    c = o_ref.shape[0]                                               # GLU split on sublane boundary
    o_ref[...] = zn[:c, :] * jax.nn.sigmoid(zn[c:, :])


def _deconv_kernel(w_ref, p_ref, o_ref):
    """Plain lane-dense ConvTranspose matmul (last layer, no BN/GLU)."""
    o_ref[...] = jnp.dot(w_ref[...], p_ref[...], preferred_element_type=jnp.float32)


# ----------------------------- Pallas wrappers -----------------------------

_VMEM_SPEC = pl.BlockSpec(memory_space=pltpu.MemorySpace.VMEM)
_PARAMS = pltpu.CompilerParams(vmem_limit_bytes=32 * 1024 * 1024)


def fused_deconv_bn_glu(w_t, patches_t, gamma, beta):
    c2 = w_t.shape[0]
    m = patches_t.shape[1]
    return pl.pallas_call(
        _deconv_bn_glu_kernel,
        out_shape=jax.ShapeDtypeStruct((c2 // 2, m), jnp.float32),
        in_specs=[_VMEM_SPEC, _VMEM_SPEC, _VMEM_SPEC, _VMEM_SPEC],
        out_specs=_VMEM_SPEC,
        compiler_params=_PARAMS,
    )(w_t, patches_t, gamma, beta)


def deconv_lane_dense(w_t, patches_t):
    c = w_t.shape[0]
    m = patches_t.shape[1]
    return pl.pallas_call(
        _deconv_kernel,
        out_shape=jax.ShapeDtypeStruct((c, m), jnp.float32),
        in_specs=[_VMEM_SPEC, _VMEM_SPEC],
        out_specs=_VMEM_SPEC,
        compiler_params=_PARAMS,
    )(w_t, patches_t)


# ----------------------------- JAX glue (im2col for transposed conv) -----------------------------

def _zero_upsample_axis(x, stride, axis):
    """Insert (stride-1) zeros between samples along `axis` via concat/reshape interleave
    (cheap contiguous op; avoids a strided scatter)."""
    if stride == 1:
        return x
    n = x.shape[axis]
    x_e = jnp.expand_dims(x, axis + 1)                       # (..., n, 1, ...)
    zshape = list(x_e.shape)
    zshape[axis + 1] = stride - 1
    up = jnp.concatenate([x_e, jnp.zeros(zshape, x.dtype)], axis=axis + 1)
    new_shape = list(x.shape)
    new_shape[axis] = n * stride
    up = up.reshape(new_shape)                               # x0,0,..,x1,0,..,x_{n-1},0,..
    return jax.lax.slice_in_dim(up, 0, (n - 1) * stride + 1, axis=axis)


def _upsample_pad_cnhw(x, kH, kW, stride, padding, output_padding):
    """x: (Cin, N, H, W) -> zero-upsampled + padded (Cin, N, Hpad, Wpad), plus (Hout, Wout)."""
    _, _, h, w = x.shape
    sh, sw = stride
    ph, pw = padding
    qh, qw = output_padding
    x_up = _zero_upsample_axis(x, sh, 2)
    x_up = _zero_upsample_axis(x_up, sw, 3)
    x_pad = jnp.pad(x_up, ((0, 0), (0, 0),
                           (kH - 1 - ph, kH - 1 - ph + qh),
                           (kW - 1 - pw, kW - 1 - pw + qw)))
    hout = (h - 1) * sh - 2 * ph + kH + qh
    wout = (w - 1) * sw - 2 * pw + kW + qw
    return x_pad, (hout, wout)


def _im2col_t_cnhw(x_pad, kH, kW, hout, wout):
    """x_pad (Cin, N, Hpad, Wpad) -> patches^T (kH*kW*Cin, N*Hout*Wout) — no big transpose."""
    cin, n = x_pad.shape[:2]
    slices = [x_pad[:, :, i:i + hout, j:j + wout] for i in range(kH) for j in range(kW)]
    p = jnp.stack(slices, axis=0)                       # (kH*kW, Cin, N, Hout, Wout)
    return p.reshape(kH * kW * cin, n * hout * wout)    # contiguous collapse, free


def _flatten_deconv_weight_t(w):
    """ConvTranspose2d weight (Cin, Cout, kH, kW) -> (Cout, kH*kW*Cin), spatially flipped."""
    cin, cout, kh, kw = w.shape
    wf = jnp.flip(w, axis=(2, 3)).transpose(2, 3, 0, 1)   # (kH, kW, Cin, Cout)
    return wf.reshape(kh * kw * cin, cout).T              # (Cout, K)


# ----------------------------- UttrDecoder forward (Pallas path) -----------------------------

def uttr_decoder_forward(x, y, params, weights):
    num_layers = params["num_layers"]
    n = x.shape[0]
    xc = jnp.transpose(x, (1, 0, 2, 3))   # (C, N, H, W) — channels-leading between layers
    yc = jnp.transpose(y, (1, 0, 2, 3))
    for i in range(1, num_layers + 1):
        kh, kw = params[f"conv{i}_kernel"]
        sh, sw = params[f"conv{i}_stride"]
        (ph, qh), (pw, qw) = _deconv_pad(kh, sh), _deconv_pad(kw, sw)

        c = jnp.tile(yc, (1, 1, xc.shape[2] // yc.shape[2], xc.shape[3] // yc.shape[3]))
        z_in = jnp.concatenate([xc, c], axis=0)                       # (Cin, N, H, W)
        x_pad, (hout, wout) = _upsample_pad_cnhw(z_in, kh, kw, (sh, sw), (ph, pw), (qh, qw))
        patches_t = _im2col_t_cnhw(x_pad, kh, kw, hout, wout)         # (K, M)
        w_t = _flatten_deconv_weight_t(weights[f"deconv{i}"])         # (C2, K)

        if i < num_layers:
            gamma = weights[f"bn{i}_gamma"][:, None]                  # (C2, 1)
            beta = weights[f"bn{i}_beta"][:, None]
            g = fused_deconv_bn_glu(w_t, patches_t, gamma, beta)      # (C, M)
            xc = g.reshape(g.shape[0], n, hout, wout)                 # free reshape
        else:
            z = deconv_lane_dense(w_t, patches_t)                     # (Cout, M)
            xc = z.reshape(z.shape[0], n, hout, wout)
    return jnp.transpose(xc, (1, 0, 2, 3))                            # back to NCHW


# ----------------------------- pure-JAX reference (for verification) -----------------------------

def _ref_conv_transpose(x, w, stride, padding, output_padding):
    cin, cout, kh, kw = w.shape
    ph, pw = padding
    qh, qw = output_padding
    wc = jnp.flip(w, axis=(2, 3)).transpose(1, 0, 2, 3)   # (Cout, Cin, kH, kW)
    return jax.lax.conv_general_dilated(
        x, wc, window_strides=(1, 1),
        padding=[(kh - 1 - ph, kh - 1 - ph + qh), (kw - 1 - pw, kw - 1 - pw + qw)],
        lhs_dilation=stride, rhs_dilation=(1, 1),
        dimension_numbers=("NCHW", "OIHW", "NCHW"),
        precision=jax.lax.Precision.HIGHEST)


def ref_forward(x, y, params, weights):
    num_layers = params["num_layers"]
    for i in range(1, num_layers + 1):
        kh, kw = params[f"conv{i}_kernel"]
        sh, sw = params[f"conv{i}_stride"]
        (ph, qh), (pw, qw) = _deconv_pad(kh, sh), _deconv_pad(kw, sw)
        c = jnp.tile(y, (1, 1, x.shape[2] // y.shape[2], x.shape[3] // y.shape[3]))
        z = _ref_conv_transpose(jnp.concatenate([x, c], axis=1), weights[f"deconv{i}"],
                                (sh, sw), (ph, pw), (qh, qw))
        if i < num_layers:
            mean = jnp.mean(z, axis=(0, 2, 3))
            var = jnp.var(z, axis=(0, 2, 3))
            zn = (z - mean[None, :, None, None]) / jnp.sqrt(var + EPS)[None, :, None, None]
            zn = zn * weights[f"bn{i}_gamma"][None, :, None, None] \
                 + weights[f"bn{i}_beta"][None, :, None, None]
            half = zn.shape[1] // 2
            x = zn[:, :half] * jax.nn.sigmoid(zn[:, half:])
        else:
            x = z
    return x


# ----------------------------- main -----------------------------

if __name__ == "__main__":
    params = {
        "num_layers": 3,
        "latent_channels": 4,
        "conv0_channels": 8,
        "conv1_channels": 8, "conv1_kernel": (4, 4), "conv1_stride": (2, 2),
        "conv2_channels": 8, "conv2_kernel": (4, 4), "conv2_stride": (2, 2),
        "conv3_channels": 2, "conv3_kernel": (3, 3), "conv3_stride": (1, 1),
    }

    key = jax.random.PRNGKey(0)
    keys = jax.random.split(key, 16)
    ki = 0
    weights = {}
    for i in range(1, params["num_layers"] + 1):
        cin = params[f"conv{i - 1}_channels"] + params["latent_channels"]
        cout = params[f"conv{i}_channels"] * (2 if i < params["num_layers"] else 1)
        kh, kw = params[f"conv{i}_kernel"]
        fan = cin * kh * kw
        weights[f"deconv{i}"] = (jax.random.normal(keys[ki], (cin, cout, kh, kw), jnp.float32)
                                 / math.sqrt(fan))
        ki += 1
        if i < params["num_layers"]:
            weights[f"bn{i}_gamma"] = 1.0 + 0.1 * jax.random.normal(keys[ki], (cout,), jnp.float32)
            ki += 1
            weights[f"bn{i}_beta"] = 0.1 * jax.random.normal(keys[ki], (cout,), jnp.float32)
            ki += 1

    x = jax.random.normal(keys[ki], (2, params["conv0_channels"], 8, 8), jnp.float32); ki += 1
    y = jax.random.normal(keys[ki], (2, params["latent_channels"], 2, 2), jnp.float32); ki += 1

    fwd = jax.jit(lambda xx, yy, ww: uttr_decoder_forward(xx, yy, params, ww))
    out = jax.block_until_ready(fwd(x, y, weights))
    ref = jax.block_until_ready(ref_forward(x, y, params, weights))

    assert out.shape == (2, params["conv3_channels"], 32, 32), out.shape
    err = float(jnp.max(jnp.abs(out - ref)))
    assert err < 1e-2, f"max abs error {err}"
    print("KERNEL_OK")
</pallas_src>

<mosaic_0001>
module attributes {stable_mosaic.version = 11 : i64} {
  func.func @_deconv_bn_glu_kernel(%arg0: memref<16x192xf32, #tpu.memory_space<vmem>>, %arg1: memref<192x512xf32, #tpu.memory_space<vmem>>, %arg2: memref<16x1xf32, #tpu.memory_space<vmem>>, %arg3: memref<16x1xf32, #tpu.memory_space<vmem>>, %arg4: memref<8x512xf32, #tpu.memory_space<vmem>>) attributes {dimension_semantics = [], scalar_prefetch = 0 : i64, scratch_operands = 0 : i64, tpu.core_type = #tpu.core_type<tc>} {
    %c0 = arith.constant 0 : index
    %c0_0 = arith.constant 0 : index
    %0 = vector.load %arg0[%c0, %c0_0] : memref<16x192xf32, #tpu.memory_space<vmem>>, vector<16x192xf32>
    %c0_1 = arith.constant 0 : index
    %c0_2 = arith.constant 0 : index
    %1 = vector.load %arg1[%c0_1, %c0_2] : memref<192x512xf32, #tpu.memory_space<vmem>>, vector<192x512xf32>
    %cst = arith.constant dense<0.000000e+00> : vector<16x512xf32>
    %2 = tpu.matmul %0, %1, %cst {dimension_numbers = #tpu.dot_dimension_numbers<[1], [0], [0], [1], [0, 0, 1, 1], [], []>} : vector<16x192xf32>, vector<192x512xf32>, vector<16x512xf32> -> vector<16x512xf32>
    %cst_3 = arith.constant dense<0.000000e+00> : vector<16xf32>
    %3 = vector.multi_reduction <add>, %2, %cst_3 [1] : vector<16x512xf32> to vector<16xf32>
    %4 = vector.shape_cast %3 : vector<16xf32> to vector<16x1xf32>
    %cst_4 = arith.constant 0.001953125 : f32
    %5 = vector.broadcast %cst_4 : f32 to vector<16x1xf32>
    %6 = arith.mulf %4, %5 : vector<16x1xf32>
    %7 = vector.broadcast %6 : vector<16x1xf32> to vector<16x512xf32>
    %8 = arith.subf %2, %7 : vector<16x512xf32>
    %9 = arith.mulf %8, %8 : vector<16x512xf32>
    %cst_5 = arith.constant dense<0.000000e+00> : vector<16xf32>
    %10 = vector.multi_reduction <add>, %9, %cst_5 [1] : vector<16x512xf32> to vector<16xf32>
    %11 = vector.shape_cast %10 : vector<16xf32> to vector<16x1xf32>
    %cst_6 = arith.constant 0.001953125 : f32
    %12 = vector.broadcast %cst_6 : f32 to vector<16x1xf32>
    %13 = arith.mulf %11, %12 : vector<16x1xf32>
    %c0_7 = arith.constant 0 : index
    %c0_8 = arith.constant 0 : index
    %14 = vector.load %arg2[%c0_7, %c0_8] : memref<16x1xf32, #tpu.memory_space<vmem>>, vector<16x1xf32>
    %cst_9 = arith.constant 9.99999974E-6 : f32
    %15 = vector.broadcast %cst_9 : f32 to vector<16x1xf32>
    %16 = arith.addf %13, %15 : vector<16x1xf32>
    %17 = math.rsqrt %16 : vector<16x1xf32>
    %18 = arith.mulf %14, %17 : vector<16x1xf32>
    %19 = vector.broadcast %18 : vector<16x1xf32> to vector<16x512xf32>
    %20 = arith.mulf %8, %19 : vector<16x512xf32>
    %c0_10 = arith.constant 0 : index
    %c0_11 = arith.constant 0 : index
    %21 = vector.load %arg3[%c0_10, %c0_11] : memref<16x1xf32, #tpu.memory_space<vmem>>, vector<16x1xf32>
    %22 = vector.broadcast %21 : vector<16x1xf32> to vector<16x512xf32>
    %23 = arith.addf %20, %22 : vector<16x512xf32>
    %24 = vector.extract_strided_slice %23 {offsets = [0, 0], sizes = [8, 512], strides = [1, 1]} : vector<16x512xf32> to vector<8x512xf32>
    %25 = vector.extract_strided_slice %23 {offsets = [8, 0], sizes = [8, 512], strides = [1, 1]} : vector<16x512xf32> to vector<8x512xf32>
    %26 = arith.negf %25 : vector<8x512xf32>
    %27 = math.exp %26 : vector<8x512xf32>
    %cst_12 = arith.constant 1.000000e+00 : f32
    %28 = vector.broadcast %cst_12 : f32 to vector<8x512xf32>
    %29 = arith.addf %28, %27 : vector<8x512xf32>
    %30 = arith.divf %28, %29 : vector<8x512xf32>
    %31 = arith.mulf %24, %30 : vector<8x512xf32>
    %c0_13 = arith.constant 0 : index
    %c0_14 = arith.constant 0 : index
    %32 = vector.load %arg4[%c0_13, %c0_14] : memref<8x512xf32, #tpu.memory_space<vmem>>, vector<8x512xf32>
    tpu.vector_store %arg4[%c0_13, %c0_14], %31 {strides = array<i32>} : memref<8x512xf32, #tpu.memory_space<vmem>>, vector<8x512xf32>,
    return
  }
}

module attributes {stable_mosaic.version = 11 : i64} {
  func.func @_deconv_bn_glu_kernel(%arg0: memref<16x192xf32, #tpu.memory_space<vmem>>, %arg1: memref<192x2048xf32, #tpu.memory_space<vmem>>, %arg2: memref<16x1xf32, #tpu.memory_space<vmem>>, %arg3: memref<16x1xf32, #tpu.memory_space<vmem>>, %arg4: memref<8x2048xf32, #tpu.memory_space<vmem>>) attributes {dimension_semantics = [], scalar_prefetch = 0 : i64, scratch_operands = 0 : i64, tpu.core_type = #tpu.core_type<tc>} {
    %c0 = arith.constant 0 : index
    %c0_0 = arith.constant 0 : index
    %0 = vector.load %arg0[%c0, %c0_0] : memref<16x192xf32, #tpu.memory_space<vmem>>, vector<16x192xf32>
    %c0_1 = arith.constant 0 : index
    %c0_2 = arith.constant 0 : index
    %1 = vector.load %arg1[%c0_1, %c0_2] : memref<192x2048xf32, #tpu.memory_space<vmem>>, vector<192x2048xf32>
    %cst = arith.constant dense<0.000000e+00> : vector<16x2048xf32>
    %2 = tpu.matmul %0, %1, %cst {dimension_numbers = #tpu.dot_dimension_numbers<[1], [0], [0], [1], [0, 0, 1, 1], [], []>} : vector<16x192xf32>, vector<192x2048xf32>, vector<16x2048xf32> -> vector<16x2048xf32>
    %cst_3 = arith.constant dense<0.000000e+00> : vector<16xf32>
    %3 = vector.multi_reduction <add>, %2, %cst_3 [1] : vector<16x2048xf32> to vector<16xf32>
    %4 = vector.shape_cast %3 : vector<16xf32> to vector<16x1xf32>
    %cst_4 = arith.constant 4.8828125E-4 : f32
    %5 = vector.broadcast %cst_4 : f32 to vector<16x1xf32>
    %6 = arith.mulf %4, %5 : vector<16x1xf32>
    %7 = vector.broadcast %6 : vector<16x1xf32> to vector<16x2048xf32>
    %8 = arith.subf %2, %7 : vector<16x2048xf32>
    %9 = arith.mulf %8, %8 : vector<16x2048xf32>
    %cst_5 = arith.constant dense<0.000000e+00> : vector<16xf32>
    %10 = vector.multi_reduction <add>, %9, %cst_5 [1] : vector<16x2048xf32> to vector<16xf32>
    %11 = vector.shape_cast %10 : vector<16xf32> to vector<16x1xf32>
    %cst_6 = arith.constant 4.8828125E-4 : f32
    %12 = vector.broadcast %cst_6 : f32 to vector<16x1xf32>
    %13 = arith.mulf %11, %12 : vector<16x1xf32>
    %c0_7 = arith.constant 0 : index
    %c0_8 = arith.constant 0 : index
    %14 = vector.load %arg2[%c0_7, %c0_8] : memref<16x1xf32, #tpu.memory_space<vmem>>, vector<16x1xf32>
    %cst_9 = arith.constant 9.99999974E-6 : f32
    %15 = vector.broadcast %cst_9 : f32 to vector<16x1xf32>
    %16 = arith.addf %13, %15 : vector<16x1xf32>
    %17 = math.rsqrt %16 : vector<16x1xf32>
    %18 = arith.mulf %14, %17 : vector<16x1xf32>
    %19 = vector.broadcast %18 : vector<16x1xf32> to vector<16x2048xf32>
    %20 = arith.mulf %8, %19 : vector<16x2048xf32>
    %c0_10 = arith.constant 0 : index
    %c0_11 = arith.constant 0 : index
    %21 = vector.load %arg3[%c0_10, %c0_11] : memref<16x1xf32, #tpu.memory_space<vmem>>, vector<16x1xf32>
    %22 = vector.broadcast %21 : vector<16x1xf32> to vector<16x2048xf32>
    %23 = arith.addf %20, %22 : vector<16x2048xf32>
    %24 = vector.extract_strided_slice %23 {offsets = [0, 0], sizes = [8, 2048], strides = [1, 1]} : vector<16x2048xf32> to vector<8x2048xf32>
    %25 = vector.extract_strided_slice %23 {offsets = [8, 0], sizes = [8, 2048], strides = [1, 1]} : vector<16x2048xf32> to vector<8x2048xf32>
    %26 = arith.negf %25 : vector<8x2048xf32>
    %27 = math.exp %26 : vector<8x2048xf32>
    %cst_12 = arith.constant 1.000000e+00 : f32
    %28 = vector.broadcast %cst_12 : f32 to vector<8x2048xf32>
    %29 = arith.addf %28, %27 : vector<8x2048xf32>
    %30 = arith.divf %28, %29 : vector<8x2048xf32>
    %31 = arith.mulf %24, %30 : vector<8x2048xf32>
    %c0_13 = arith.constant 0 : index
    %c0_14 = arith.constant 0 : index
    %32 = vector.load %arg4[%c0_13, %c0_14] : memref<8x2048xf32, #tpu.memory_space<vmem>>, vector<8x2048xf32>
    tpu.vector_store %arg4[%c0_13, %c0_14], %31 {strides = array<i32>} : memref<8x2048xf32, #tpu.memory_space<vmem>>, vector<8x2048xf32>,
    return
  }
}

module attributes {stable_mosaic.version = 11 : i64} {
  func.func @_deconv_kernel(%arg0: memref<2x108xf32, #tpu.memory_space<vmem>>, %arg1: memref<108x2048xf32, #tpu.memory_space<vmem>>, %arg2: memref<2x2048xf32, #tpu.memory_space<vmem>>) attributes {dimension_semantics = [], scalar_prefetch = 0 : i64, scratch_operands = 0 : i64, tpu.core_type = #tpu.core_type<tc>} {
    %c0 = arith.constant 0 : index
    %c0_0 = arith.constant 0 : index
    %0 = vector.load %arg0[%c0, %c0_0] : memref<2x108xf32, #tpu.memory_space<vmem>>, vector<2x108xf32>
    %c0_1 = arith.constant 0 : index
    %c0_2 = arith.constant 0 : index
    %1 = vector.load %arg1[%c0_1, %c0_2] : memref<108x2048xf32, #tpu.memory_space<vmem>>, vector<108x2048xf32>
    %cst = arith.constant dense<0.000000e+00> : vector<2x2048xf32>
    %2 = tpu.matmul %0, %1, %cst {dimension_numbers = #tpu.dot_dimension_numbers<[1], [0], [0], [1], [0, 0, 1, 1], [], []>} : vector<2x108xf32>, vector<108x2048xf32>, vector<2x2048xf32> -> vector<2x2048xf32>
    %c0_3 = arith.constant 0 : index
    %c0_4 = arith.constant 0 : index
    %3 = vector.load %arg2[%c0_3, %c0_4] : memref<2x2048xf32, #tpu.memory_space<vmem>>, vector<2x2048xf32>
    tpu.vector_store %arg2[%c0_3, %c0_4], %2 {strides = array<i32>} : memref<2x2048xf32, #tpu.memory_space<vmem>>, vector<2x2048xf32>,
    return
  }
}

</mosaic_0001>

<llo_original>
// kernel: _lambda_.3
$region0: #{_lambda_.3}
  #allocation0 [shape = 'u32[]', space=smem, size = 0x4, offset = 0x4, fixed_abs, tag = 'smem constant byte address 0x4 - core index']
  #allocation1 [shape = 'u32[144,128]{1,0:T(1,128)}', space=vmem, size = 0x12000, scoped, tag = 'internal scratch']
  %s0 = inlined_call_operand.vmem [shape: f32[16,192], index: 0, kind: input, shape index: {}]
  %s1 = inlined_call_operand.vmem [shape: f32[192,512], index: 1, kind: input, shape index: {}]
  %s2 = inlined_call_operand.vmem [shape: f32[16,1], index: 2, kind: input, shape index: {}]
  %s3 = inlined_call_operand.vmem [shape: f32[16,1], index: 3, kind: input, shape index: {}]
  %s4 = inlined_call_operand.vmem [shape: f32[8,512], index: 4, kind: output, shape index: {}]
  %s5 = sld [smem:[#allocation0]]
  $region26: #{_lambda_.3} parent=0
    _
  %s7 = ssub.s32 1, %s5
  %s8 = scalar_select 0, %s7, %s5
  // Predicated region
  $region2: #{_lambda_.3} parent=0 // pred_check
    _
  $region3: #{_lambda_.3} parent=0 // pred_check_branch
    %10 = sbr.rel (0) target = $region5
  $region4: #{_lambda_.3} parent=0 // pred_region
    _
  $region5: #{_lambda_.3} parent=0 // pred_fallthru
    _
  // Predicated region
  $region6: #{_lambda_.3} parent=0 // pred_check
    _
  $region7: #{_lambda_.3} parent=0 // pred_check_branch
    %12 = sbr.rel (0) target = $region9
  $region8: #{_lambda_.3} parent=0 // pred_region
    _
  $region9: #{_lambda_.3} parent=0 // pred_fallthru
    _
  // Predicated region
  $region10: #{_lambda_.3} parent=0 // pred_check
    _
  $region11: #{_lambda_.3} parent=0 // pred_check_branch
    %14 = sbr.rel (0) target = $region13
  $region12: #{_lambda_.3} parent=0 // pred_region
    _
  $region13: #{_lambda_.3} parent=0 // pred_fallthru
    _
  // Predicated region
  $region14: #{_lambda_.3} parent=0 // pred_check
    _
  $region15: #{_lambda_.3} parent=0 // pred_check_branch
    %16 = sbr.rel (0) target = $region17
  $region16: #{_lambda_.3} parent=0 // pred_region
    _
  $region17: #{_lambda_.3} parent=0 // pred_fallthru
    _
  %v17 = vld [vmem:[%s0] sm:$0xff]
  %v18 = vld [vmem:[%s0 + $0x8] sm:$0xff]
  %v19 = vld [vmem:[%s0 + $0x10] sm:$0xff]
  %v20 = vld [vmem:[%s0 + $0x18] sm:$0xff]
  %v21 = vld [vmem:[%s1] sm:$0xff]
  %v22 = vld [vmem:[%s1 + $0x8] sm:$0xff]
  %v23 = vld [vmem:[%s1 + $0x10] sm:$0xff]
  %v24 = vld [vmem:[%s1 + $0x18] sm:$0xff]
  %v25 = vld [vmem:[%s1 + $0x20] sm:$0xff]
  %v26 = vld [vmem:[%s1 + $0x28] sm:$0xff]
  %v27 = vld [vmem:[%s1 + $0x30] sm:$0xff]
  %v28 = vld [vmem:[%s1 + $0x38] sm:$0xff]
  %v29 = vld [vmem:[%s1 + $0x40] sm:$0xff]
  %v30 = vld [vmem:[%s1 + $0x48] sm:$0xff]
  %v31 = vld [vmem:[%s1 + $0x50] sm:$0xff]
  %v32 = vld [vmem:[%s1 + $0x58] sm:$0xff]
  %v33 = vld [vmem:[%s1 + $0x60] sm:$0xff]
  %v34 = vld [vmem:[%s1 + $0x68] sm:$0xff]
  %v35 = vld [vmem:[%s1 + $0x70] sm:$0xff]
  %v36 = vld [vmem:[%s1 + $0x78] sm:$0xff]
  %v37 = vld [vmem:[%s1 + $0x80] sm:$0xff]
  %v38 = vld [vmem:[%s1 + $0x88] sm:$0xff]
  %v39 = vld [vmem:[%s1 + $0x90] sm:$0xff]
  %v40 = vld [vmem:[%s1 + $0x98] sm:$0xff]
  %v41 = vld [vmem:[%s1 + $0xa0] sm:$0xff]
  %v42 = vld [vmem:[%s1 + $0xa8] sm:$0xff]
  %v43 = vld [vmem:[%s1 + $0xb0] sm:$0xff]
  %v44 = vld [vmem:[%s1 + $0xb8] sm:$0xff]
  %v45 = vld [vmem:[%s1 + $0xc0] sm:$0xff]
  %v46 = vld [vmem:[%s1 + $0xc8] sm:$0xff]
  %v47 = vld [vmem:[%s1 + $0xd0] sm:$0xff]
  %v48 = vld [vmem:[%s1 + $0xd8] sm:$0xff]
  %v49 = vld [vmem:[%s1 + $0xe0] sm:$0xff]
  %v50 = vld [vmem:[%s1 + $0xe8] sm:$0xff]
  %v51 = vld [vmem:[%s1 + $0xf0] sm:$0xff]
  %v52 = vld [vmem:[%s1 + $0xf8] sm:$0xff]
  %v53 = vld [vmem:[%s1 + $0x100] sm:$0xff]
  %v54 = vld [vmem:[%s1 + $0x108] sm:$0xff]
  %v55 = vld [vmem:[%s1 + $0x110] sm:$0xff]
  %v56 = vld [vmem:[%s1 + $0x118] sm:$0xff]
  %v57 = vld [vmem:[%s1 + $0x120] sm:$0xff]
  %v58 = vld [vmem:[%s1 + $0x128] sm:$0xff]
  %v59 = vld [vmem:[%s1 + $0x130] sm:$0xff]
  %v60 = vld [vmem:[%s1 + $0x138] sm:$0xff]
  %v61 = vld [vmem:[%s1 + $0x140] sm:$0xff]
  %v62 = vld [vmem:[%s1 + $0x148] sm:$0xff]
  %v63 = vld [vmem:[%s1 + $0x150] sm:$0xff]
  %v64 = vld [vmem:[%s1 + $0x158] sm:$0xff]
  %v65 = vld [vmem:[%s1 + $0x160] sm:$0xff]
  %v66 = vld [vmem:[%s1 + $0x168] sm:$0xff]
  %v67 = vld [vmem:[%s1 + $0x170] sm:$0xff]
  %v68 = vld [vmem:[%s1 + $0x178] sm:$0xff]
  %v69 = vld [vmem:[%s1 + $0x180] sm:$0xff]
  %v70 = vld [vmem:[%s1 + $0x188] sm:$0xff]
  %v71 = vld [vmem:[%s1 + $0x190] sm:$0xff]
  %v72 = vld [vmem:[%s1 + $0x198] sm:$0xff]
  %v73 = vld [vmem:[%s1 + $0x1a0] sm:$0xff]
  %v74 = vld [vmem:[%s1 + $0x1a8] sm:$0xff]
  %v75 = vld [vmem:[%s1 + $0x1b0] sm:$0xff]
  %v76 = vld [vmem:[%s1 + $0x1b8] sm:$0xff]
  %v77 = vld [vmem:[%s1 + $0x1c0] sm:$0xff]
  %v78 = vld [vmem:[%s1 + $0x1c8] sm:$0xff]
  %v79 = vld [vmem:[%s1 + $0x1d0] sm:$0xff]
  %v80 = vld [vmem:[%s1 + $0x1d8] sm:$0xff]
  %v81 = vld [vmem:[%s1 + $0x1e0] sm:$0xff]
  %v82 = vld [vmem:[%s1 + $0x1e8] sm:$0xff]
  %v83 = vld [vmem:[%s1 + $0x1f0] sm:$0xff]
  %v84 = vld [vmem:[%s1 + $0x1f8] sm:$0xff]
  %v85 = vld [vmem:[%s1 + $0x200] sm:$0xff]
  %v86 = vld [vmem:[%s1 + $0x208] sm:$0xff]
  %v87 = vld [vmem:[%s1 + $0x210] sm:$0xff]
  %v88 = vld [vmem:[%s1 + $0x218] sm:$0xff]
  %v89 = vld [vmem:[%s1 + $0x220] sm:$0xff]
  %v90 = vld [vmem:[%s1 + $0x228] sm:$0xff]
  %v91 = vld [vmem:[%s1 + $0x230] sm:$0xff]
  %v92 = vld [vmem:[%s1 + $0x238] sm:$0xff]
  %v93 = vld [vmem:[%s1 + $0x240] sm:$0xff]
  %v94 = vld [vmem:[%s1 + $0x248] sm:$0xff]
  %v95 = vld [vmem:[%s1 + $0x250] sm:$0xff]
  %v96 = vld [vmem:[%s1 + $0x258] sm:$0xff]
  %v97 = vld [vmem:[%s1 + $0x260] sm:$0xff]
  %v98 = vld [vmem:[%s1 + $0x268] sm:$0xff]
  %v99 = vld [vmem:[%s1 + $0x270] sm:$0xff]
  %v100 = vld [vmem:[%s1 + $0x278] sm:$0xff]
  %v101 = vld [vmem:[%s1 + $0x280] sm:$0xff]
  %v102 = vld [vmem:[%s1 + $0x288] sm:$0xff]
  %v103 = vld [vmem:[%s1 + $0x290] sm:$0xff]
  %v104 = vld [vmem:[%s1 + $0x298] sm:$0xff]
  %v105 = vld [vmem:[%s1 + $0x2a0] sm:$0xff]
  %v106 = vld [vmem:[%s1 + $0x2a8] sm:$0xff]
  %v107 = vld [vmem:[%s1 + $0x2b0] sm:$0xff]
  %v108 = vld [vmem:[%s1 + $0x2b8] sm:$0xff]
  %v109 = vld [vmem:[%s1 + $0x2c0] sm:$0xff]
  %v110 = vld [vmem:[%s1 + $0x2c8] sm:$0xff]
  %v111 = vld [vmem:[%s1 + $0x2d0] sm:$0xff]
  %v112 = vld [vmem:[%s1 + $0x2d8] sm:$0xff]
  %v113 = vld [vmem:[%s1 + $0x2e0] sm:$0xff]
  %v114 = vld [vmem:[%s1 + $0x2e8] sm:$0xff]
  %v115 = vld [vmem:[%s1 + $0x2f0] sm:$0xff]
  %v116 = vld [vmem:[%s1 + $0x2f8] sm:$0xff]
  %vm117 = vcmask 523264
  %v119 = vsel %vm117, %v18, 0
  %v122 = vsel %vm117, %v20, 0
  %124 = vmatprep.subr.mxu0 %v22
  %125 = vmatpush1.msra.mxu0 %v21
  %126 = vmatprep.subr.mxu0 %v26
  %127 = vmatpush1.msra.mxu0 %v25
  %128 = vmatprep.subr.mxu0 %v30
  %129 = vmatpush1.msra.mxu0 %v29
  %130 = vmatprep.subr.mxu0 %v34
  %131 = vmatpush1.msra.mxu0 %v33
  %132 = vmatprep.subr.mxu0 %v38
  %133 = vmatpush1.msra.mxu0 %v37
  %134 = vmatprep.subr.mxu0 %v42
  %135 = vmatpush1.msra.mxu0 %v41
  %136 = vmatprep.subr.mxu0 %v46
  %137 = vmatpush1.msra.mxu0 %v45
  %138 = vmatprep.subr.mxu0 %v50
  %139 = vmatpush1.msra.mxu0 %v49
  %140 = vmatprep.subr.mxu0 %v54
  %141 = vmatpush1.msra.mxu0 %v53
  %142 = vmatprep.subr.mxu0 %v58
  %143 = vmatpush1.msra.mxu0 %v57
  %144 = vmatprep.subr.mxu0 %v62
  %145 = vmatpush1.msra.mxu0 %v61
  %146 = vmatprep.subr.mxu0 %v66
  %147 = vmatpush1.msra.mxu0 %v65
  %148 = vmatprep.subr.mxu0 %v70
  %149 = vmatpush1.msra.mxu0 %v69
  %150 = vmatprep.subr.mxu0 %v74
  %151 = vmatpush1.msra.mxu0 %v73
  %152 = vmatprep.subr.mxu0 %v78
  %153 = vmatpush1.msra.mxu0 %v77
  %154 = vmatprep.subr.mxu0 %v82
  %155 = vmatpush1.msra.mxu0 %v81
  %156 = vmatprep.subr.mxu0 %v86
  %157 = vmatpush1.msra.mxu0 %v85
  %158 = vmatprep.subr.mxu0 %v90
  %159 = vmatpush1.msra.mxu0 %v89
  %160 = vmatprep.subr.mxu0 %v94
  %161 = vmatpush1.msra.mxu0 %v93
  %162 = vmatprep.subr.mxu0 %v98
  %163 = vmatpush1.msra.mxu0 %v97
  %164 = vmatprep.subr.mxu0 %v102
  %165 = vmatpush1.msra.mxu0 %v101
  %166 = vmatprep.subr.mxu0 %v106
  %167 = vmatpush1.msra.mxu0 %v105
  %168 = vmatprep.subr.mxu0 %v110
  %169 = vmatpush1.msra.mxu0 %v109
  %170 = vmatprep.subr.mxu0 %v114
  %171 = vmatpush1.msra.mxu0 %v113
  %172 = vmatprep.subr.mxu0 0.0
  %173 = vmatpush1.msra.mxu0 0.0
  %174 = vmatprep.subr.mxu0 0.0
  %175 = vmatpush1.msra.mxu0 0.0
  %176 = vmatprep.subr.mxu0 0.0
  %177 = vmatpush1.msra.mxu0 0.0
  %178 = vmatprep.subr.mxu0 0.0
  %179 = vmatpush1.msra.mxu0 0.0
  %180 = vmatprep.subr.mxu0 0.0
  %181 = vmatpush1.msra.mxu0 0.0
  %182 = vmatprep.subr.mxu0 0.0
  %183 = vmatpush1.msra.mxu0 0.0
  %184 = vmatprep.subr.mxu0 0.0
  %185 = vmatpush1.msra.mxu0 0.0
  %186 = vmatprep.subr.mxu0 0.0
  %187 = vmatpush1.msra.mxu0 0.0
  %188 = vmatprep.mubr.f32.mxu0 %v119
  %189 = vmatmul.mubr.f32.gmra.mrb[0].mxu0 %v17
  %v190 = vpop.f32.mrb[0].mxu0
  %v191 = vadd.f32 0.0, %v190
  %v192 = vpop.f32.mrb[0].mxu0
  %v193 = vadd.f32 0.0, %v192
  %194 = vmatprep.mubr.f32.mxu0 %v122
  %195 = vmatmul.mubr.f32.gmra.mrb[0].mxu0 %v19
  %v196 = vpop.f32.mrb[0].mxu0
  %v197 = vadd.f32 0.0, %v196
  %v198 = vpop.f32.mrb[0].mxu0
  %v199 = vadd.f32 0.0, %v198
  %200 = vdwg.mxu0
  %201 = vmatprep.subr.mxu0 %v24
  %202 = vmatpush1.msra.mxu0 %v23
  %203 = vmatprep.subr.mxu0 %v28
  %204 = vmatpush1.msra.mxu0 %v27
  %205 = vmatprep.subr.mxu0 %v32
  %206 = vmatpush1.msra.mxu0 %v31
  %207 = vmatprep.subr.mxu0 %v36
  %208 = vmatpush1.msra.mxu0 %v35
  %209 = vmatprep.subr.mxu0 %v40
  %210 = vmatpush1.msra.mxu0 %v39
  %211 = vmatprep.subr.mxu0 %v44
  %212 = vmatpush1.msra.mxu0 %v43
  %213 = vmatprep.subr.mxu0 %v48
  %214 = vmatpush1.msra.mxu0 %v47
  %215 = vmatprep.subr.mxu0 %v52
  %216 = vmatpush1.msra.mxu0 %v51
  %217 = vmatprep.subr.mxu0 %v56
  %218 = vmatpush1.msra.mxu0 %v55
  %219 = vmatprep.subr.mxu0 %v60
  %220 = vmatpush1.msra.mxu0 %v59
  %221 = vmatprep.subr.mxu0 %v64
  %222 = vmatpush1.msra.mxu0 %v63
  %223 = vmatprep.subr.mxu0 %v68
  %224 = vmatpush1.msra.mxu0 %v67
  %225 = vmatprep.subr.mxu0 %v72
  %226 = vmatpush1.msra.mxu0 %v71
  %227 = vmatprep.subr.mxu0 %v76
  %228 = vmatpush1.msra.mxu0 %v75
  %229 = vmatprep.subr.mxu0 %v80
  %230 = vmatpush1.msra.mxu0 %v79
  %231 = vmatprep.subr.mxu0 %v84
  %232 = vmatpush1.msra.mxu0 %v83
  %233 = vmatprep.subr.mxu0 %v88
  %234 = vmatpush1.msra.mxu0 %v87
  %235 = vmatprep.subr.mxu0 %v92
  %236 = vmatpush1.msra.mxu0 %v91
  %237 = vmatprep.subr.mxu0 %v96
  %238 = vmatpush1.msra.mxu0 %v95
  %239 = vmatprep.subr.mxu0 %v100
  %240 = vmatpush1.msra.mxu0 %v99
  %241 = vmatprep.subr.mxu0 %v104
  %242 = vmatpush1.msra.mxu0 %v103
  %243 = vmatprep.subr.mxu0 %v108
  %244 = vmatpush1.msra.mxu0 %v107
  %245 = vmatprep.subr.mxu0 %v112
  %246 = vmatpush1.msra.mxu0 %v111
  %247 = vmatprep.subr.mxu0 %v116
  %248 = vmatpush1.msra.mxu0 %v115
  %249 = vmatprep.subr.mxu0 0.0
  %250 = vmatpush1.msra.mxu0 0.0
  %251 = vmatprep.subr.mxu0 0.0
  %252 = vmatpush1.msra.mxu0 0.0
  %253 = vmatprep.subr.mxu0 0.0
  %254 = vmatpush1.msra.mxu0 0.0
  %255 = vmatprep.subr.mxu0 0.0
  %256 = vmatpush1.msra.mxu0 0.0
  %257 = vmatprep.subr.mxu0 0.0
  %258 = vmatpush1.msra.mxu0 0.0
  %259 = vmatprep.subr.mxu0 0.0
  %260 = vmatpush1.msra.mxu0 0.0
  %261 = vmatprep.subr.mxu0 0.0
  %262 = vmatpush1.msra.mxu0 0.0
  %263 = vmatprep.subr.mxu0 0.0
  %264 = vmatpush1.msra.mxu0 0.0
  %265 = vmatprep.mubr.f32.mxu0 %v119
  %266 = vmatmul.mubr.f32.gmra.mrb[0].mxu0 %v17
  %v267 = vpop.f32.mrb[0].mxu0
  %v268 = vadd.f32 0.0, %v267
  %v269 = vpop.f32.mrb[0].mxu0
  %v270 = vadd.f32 0.0, %v269
  %271 = vmatprep.mubr.f32.mxu0 %v122
  %272 = vmatmul.mubr.f32.gmra.mrb[0].mxu0 %v19
  %v273 = vpop.f32.mrb[0].mxu0
  %v274 = vadd.f32 0.0, %v273
  %v275 = vpop.f32.mrb[0].mxu0
  %v276 = vadd.f32 0.0, %v275
  %277 = vdwg.mxu0
  %v278 = vadd.f32 %v191, %v193
  %v279 = vadd.f32 %v278, %v268
  %v280 = vadd.f32 %v279, %v270
  %281 = vadd.xlane.f32.xlu0 %v280
  %v282 = vpop.xlane.xlu0 %281
  %v283 = vadd.f32 %v197, %v199
  %v284 = vadd.f32 %v283, %v274
  %v285 = vadd.f32 %v284, %v276
  %286 = vadd.xlane.f32.xlu0 %v285
  %v287 = vpop.xlane.xlu0 %286
  %v288 = vmul.f32 %v282, 0.001953125
  %v289 = vmul.f32 %v287, 0.001953125
  %v290 = vsub.f32 %v191, %v288
  %v291 = vsub.f32 %v193, %v288
  %v292 = vsub.f32 %v268, %v288
  %v293 = vsub.f32 %v270, %v288
  %v294 = vsub.f32 %v197, %v289
  %v295 = vsub.f32 %v199, %v289
  %v296 = vsub.f32 %v274, %v289
  %v297 = vsub.f32 %v276, %v289
  %v298 = vmul.f32 %v290, %v290
  %v299 = vmul.f32 %v291, %v291
  %v300 = vmul.f32 %v292, %v292
  %v301 = vmul.f32 %v293, %v293
  %v302 = vmul.f32 %v294, %v294
  %v303 = vmul.f32 %v295, %v295
  %v304 = vmul.f32 %v296, %v296
  %v305 = vmul.f32 %v297, %v297
  %v306 = vadd.f32 %v298, %v299
  %v307 = vadd.f32 %v306, %v300
  %v308 = vadd.f32 %v307, %v301
  %309 = vadd.xlane.f32.xlu0 %v308
  %v310 = vpop.xlane.xlu0 %309
  %v311 = vadd.f32 %v302, %v303
  %v312 = vadd.f32 %v311, %v304
  %v313 = vadd.f32 %v312, %v305
  %314 = vadd.xlane.f32.xlu0 %v313
  %v315 = vpop.xlane.xlu0 %314
  %v316 = vmul.f32 %v310, 0.001953125
  %v317 = vmul.f32 %v315, 0.001953125
  %v318 = vld [vmem:[%s2] sm:$0xff]
  %v319 = vld [vmem:[%s2 + $0x8] sm:$0xff]
  %v320 = vadd.f32 %v316, 1e-05
  %v321 = vadd.f32 %v317, 1e-05
  %v322 = vrsqrt.pop %v320
  %v323 = vrsqrt.pop %v321
  %v324 = vmul.f32 %v318, %v322
  %v325 = vmul.f32 %v319, %v323
  %327 = vset.pattern.permute.xlu0 0
  %328 = vperm.xlu0 %327, %v324
  %v329 = vpop.permute.xlu0 %328
  %332 = vset.pattern.permute.xlu0 0
  %333 = vperm.xlu0 %332, %v325
  %v334 = vpop.permute.xlu0 %333
  %v336 = vmul.f32 %v290, %v329
  %v337 = vmul.f32 %v291, %v329
  %v338 = vmul.f32 %v292, %v329
  %v339 = vmul.f32 %v293, %v329
  %v340 = vmul.f32 %v294, %v334
  %v341 = vmul.f32 %v295, %v334
  %v342 = vmul.f32 %v296, %v334
  %v343 = vmul.f32 %v297, %v334
  %v344 = vld [vmem:[%s3] sm:$0xff]
  %v345 = vld [vmem:[%s3 + $0x8] sm:$0xff]
  %347 = vset.pattern.permute.xlu0 0
  %348 = vperm.xlu0 %347, %v344
  %v349 = vpop.permute.xlu0 %348
  %352 = vset.pattern.permute.xlu0 0
  %353 = vperm.xlu0 %352, %v345
  %v354 = vpop.permute.xlu0 %353
  %v356 = vadd.f32 %v336, %v349
  %v357 = vadd.f32 %v337, %v349
  %v358 = vadd.f32 %v338, %v349
  %v359 = vadd.f32 %v339, %v349
  %v360 = vadd.f32 %v340, %v354
  %v361 = vadd.f32 %v341, %v354
  %v362 = vadd.f32 %v342, %v354
  %v363 = vadd.f32 %v343, %v354
  %v364 = vxor.u32 %v360, 2147483648
  %v365 = vxor.u32 %v361, 2147483648
  %v366 = vxor.u32 %v362, 2147483648
  %v367 = vxor.u32 %v363, 2147483648
  %v368 = vmul.f32 %v364, 1.442695
  %v369 = vpow.pop %v368
  %v370 = vmul.f32 %v365, 1.442695
  %v371 = vpow.pop %v370
  %v372 = vmul.f32 %v366, 1.442695
  %v373 = vpow.pop %v372
  %v374 = vmul.f32 %v367, 1.442695
  %v375 = vpow.pop %v374
  %v376 = vadd.f32 %v369, 1.0
  %v377 = vadd.f32 %v371, 1.0
  %v378 = vadd.f32 %v373, 1.0
  %v379 = vadd.f32 %v375, 1.0
  %v380 = vrcp.pop %v376
  %v381 = vmul.f32 1.0, %v380
  %v382 = vrcp.pop %v377
  %v383 = vmul.f32 1.0, %v382
  %v384 = vrcp.pop %v378
  %v385 = vmul.f32 1.0, %v384
  %v386 = vrcp.pop %v379
  %v387 = vmul.f32 1.0, %v386
  %v388 = vmul.f32 %v356, %v381
  %v389 = vmul.f32 %v357, %v383
  %v390 = vmul.f32 %v358, %v385
  %v391 = vmul.f32 %v359, %v387
  %392 = vst [vmem:[%s4] sm:$0xff] %v388
  %393 = vst [vmem:[%s4 + $0x8] sm:$0xff] %v389
  %394 = vst [vmem:[%s4 + $0x10] sm:$0xff] %v390
  %395 = vst [vmem:[%s4 + $0x18] sm:$0xff] %v391
  // Predicated region
  $region18: #{_lambda_.3} parent=0 // pred_check
    _
  $region19: #{_lambda_.3} parent=0 // pred_check_branch
    %397 = sbr.rel (0) target = $region21
  $region20: #{_lambda_.3} parent=0 // pred_region
    _
  $region21: #{_lambda_.3} parent=0 // pred_fallthru
    _
  // Predicated region
  $region22: #{_lambda_.3} parent=0 // pred_check
    _
  $region23: #{_lambda_.3} parent=0 // pred_check_branch
    %399 = sbr.rel (0) target = $region25
  $region24: #{_lambda_.3} parent=0 // pred_region
    _
  $region25: #{_lambda_.3} parent=0 // pred_fallthru
    _

// kernel: _lambda_.4
$region0: #{_lambda_.4}
  #allocation0 [shape = 'u32[]', space=smem, size = 0x4, offset = 0x4, fixed_abs, tag = 'smem constant byte address 0x4 - core index']
  #allocation1 [shape = 'u32[144,128]{1,0:T(1,128)}', space=vmem, size = 0x12000, scoped, tag = 'internal scratch']
  %s0 = inlined_call_operand.vmem [shape: f32[16,192], index: 0, kind: input, shape index: {}]
  %s1 = inlined_call_operand.vmem [shape: f32[192,2048], index: 1, kind: input, shape index: {}]
  %s2 = inlined_call_operand.vmem [shape: f32[16,1], index: 2, kind: input, shape index: {}]
  %s3 = inlined_call_operand.vmem [shape: f32[16,1], index: 3, kind: input, shape index: {}]
  %s4 = inlined_call_operand.vmem [shape: f32[8,2048], index: 4, kind: output, shape index: {}]
  %s5 = sld [smem:[#allocation0]]
  $region26: #{_lambda_.4} parent=0
    _
  %s7 = ssub.s32 1, %s5
  %s8 = scalar_select 0, %s7, %s5
  // Predicated region
  $region2: #{_lambda_.4} parent=0 // pred_check
    _
  $region3: #{_lambda_.4} parent=0 // pred_check_branch
    %10 = sbr.rel (0) target = $region5
  $region4: #{_lambda_.4} parent=0 // pred_region
    _
  $region5: #{_lambda_.4} parent=0 // pred_fallthru
    _
  // Predicated region
  $region6: #{_lambda_.4} parent=0 // pred_check
    _
  $region7: #{_lambda_.4} parent=0 // pred_check_branch
    %12 = sbr.rel (0) target = $region9
  $region8: #{_lambda_.4} parent=0 // pred_region
    _
  $region9: #{_lambda_.4} parent=0 // pred_fallthru
    _
  // Predicated region
  $region10: #{_lambda_.4} parent=0 // pred_check
    _
  $region11: #{_lambda_.4} parent=0 // pred_check_branch
    %14 = sbr.rel (0) target = $region13
  $region12: #{_lambda_.4} parent=0 // pred_region
    _
  $region13: #{_lambda_.4} parent=0 // pred_fallthru
    _
  // Predicated region
  $region14: #{_lambda_.4} parent=0 // pred_check
    _
  $region15: #{_lambda_.4} parent=0 // pred_check_branch
    %16 = sbr.rel (0) target = $region17
  $region16: #{_lambda_.4} parent=0 // pred_region
    _
  $region17: #{_lambda_.4} parent=0 // pred_fallthru
    _
  %v17 = vld [vmem:[%s0] sm:$0xff]
  %v18 = vld [vmem:[%s0 + $0x8] sm:$0xff]
  %v19 = vld [vmem:[%s0 + $0x10] sm:$0xff]
  %v20 = vld [vmem:[%s0 + $0x18] sm:$0xff]
  %v21 = vld [vmem:[%s1] sm:$0xff]
  %v22 = vld [vmem:[%s1 + $0x8] sm:$0xff]
  %v23 = vld [vmem:[%s1 + $0x10] sm:$0xff]
  %v24 = vld [vmem:[%s1 + $0x18] sm:$0xff]
  %v25 = vld [vmem:[%s1 + $0x20] sm:$0xff]
  %v26 = vld [vmem:[%s1 + $0x28] sm:$0xff]
  %v27 = vld [vmem:[%s1 + $0x30] sm:$0xff]
  %v28 = vld [vmem:[%s1 + $0x38] sm:$0xff]
  %v29 = vld [vmem:[%s1 + $0x40] sm:$0xff]
  %v30 = vld [vmem:[%s1 + $0x48] sm:$0xff]
  %v31 = vld [vmem:[%s1 + $0x50] sm:$0xff]
  %v32 = vld [vmem:[%s1 + $0x58] sm:$0xff]
  %v33 = vld [vmem:[%s1 + $0x60] sm:$0xff]
  %v34 = vld [vmem:[%s1 + $0x68] sm:$0xff]
  %v35 = vld [vmem:[%s1 + $0x70] sm:$0xff]
  %v36 = vld [vmem:[%s1 + $0x78] sm:$0xff]
  %v37 = vld [vmem:[%s1 + $0x80] sm:$0xff]
  %v38 = vld [vmem:[%s1 + $0x88] sm:$0xff]
  %v39 = vld [vmem:[%s1 + $0x90] sm:$0xff]
  %v40 = vld [vmem:[%s1 + $0x98] sm:$0xff]
  %v41 = vld [vmem:[%s1 + $0xa0] sm:$0xff]
  %v42 = vld [vmem:[%s1 + $0xa8] sm:$0xff]
  %v43 = vld [vmem:[%s1 + $0xb0] sm:$0xff]
  %v44 = vld [vmem:[%s1 + $0xb8] sm:$0xff]
  %v45 = vld [vmem:[%s1 + $0xc0] sm:$0xff]
  %v46 = vld [vmem:[%s1 + $0xc8] sm:$0xff]
  %v47 = vld [vmem:[%s1 + $0xd0] sm:$0xff]
  %v48 = vld [vmem:[%s1 + $0xd8] sm:$0xff]
  %v49 = vld [vmem:[%s1 + $0xe0] sm:$0xff]
  %v50 = vld [vmem:[%s1 + $0xe8] sm:$0xff]
  %v51 = vld [vmem:[%s1 + $0xf0] sm:$0xff]
  %v52 = vld [vmem:[%s1 + $0xf8] sm:$0xff]
  %v53 = vld [vmem:[%s1 + $0x100] sm:$0xff]
  %v54 = vld [vmem:[%s1 + $0x108] sm:$0xff]
  %v55 = vld [vmem:[%s1 + $0x110] sm:$0xff]
  %v56 = vld [vmem:[%s1 + $0x118] sm:$0xff]
  %v57 = vld [vmem:[%s1 + $0x120] sm:$0xff]
  %v58 = vld [vmem:[%s1 + $0x128] sm:$0xff]
  %v59 = vld [vmem:[%s1 + $0x130] sm:$0xff]
  %v60 = vld [vmem:[%s1 + $0x138] sm:$0xff]
  %v61 = vld [vmem:[%s1 + $0x140] sm:$0xff]
  %v62 = vld [vmem:[%s1 + $0x148] sm:$0xff]
  %v63 = vld [vmem:[%s1 + $0x150] sm:$0xff]
  %v64 = vld [vmem:[%s1 + $0x158] sm:$0xff]
  %v65 = vld [vmem:[%s1 + $0x160] sm:$0xff]
  %v66 = vld [vmem:[%s1 + $0x168] sm:$0xff]
  %v67 = vld [vmem:[%s1 + $0x170] sm:$0xff]
  %v68 = vld [vmem:[%s1 + $0x178] sm:$0xff]
  %v69 = vld [vmem:[%s1 + $0x180] sm:$0xff]
  %v70 = vld [vmem:[%s1 + $0x188] sm:$0xff]
  %v71 = vld [vmem:[%s1 + $0x190] sm:$0xff]
  %v72 = vld [vmem:[%s1 + $0x198] sm:$0xff]
  %v73 = vld [vmem:[%s1 + $0x1a0] sm:$0xff]
  %v74 = vld [vmem:[%s1 + $0x1a8] sm:$0xff]
  %v75 = vld [vmem:[%s1 + $0x1b0] sm:$0xff]
  %v76 = vld [vmem:[%s1 + $0x1b8] sm:$0xff]
  %v77 = vld [vmem:[%s1 + $0x1c0] sm:$0xff]
  %v78 = vld [vmem:[%s1 + $0x1c8] sm:$0xff]
  %v79 = vld [vmem:[%s1 + $0x1d0] sm:$0xff]
  %v80 = vld [vmem:[%s1 + $0x1d8] sm:$0xff]
  %v81 = vld [vmem:[%s1 + $0x1e0] sm:$0xff]
  %v82 = vld [vmem:[%s1 + $0x1e8] sm:$0xff]
  %v83 = vld [vmem:[%s1 + $0x1f0] sm:$0xff]
  %v84 = vld [vmem:[%s1 + $0x1f8] sm:$0xff]
  %v85 = vld [vmem:[%s1 + $0x200] sm:$0xff]
  %v86 = vld [vmem:[%s1 + $0x208] sm:$0xff]
  %v87 = vld [vmem:[%s1 + $0x210] sm:$0xff]
  %v88 = vld [vmem:[%s1 + $0x218] sm:$0xff]
  %v89 = vld [vmem:[%s1 + $0x220] sm:$0xff]
  %v90 = vld [vmem:[%s1 + $0x228] sm:$0xff]
  %v91 = vld [vmem:[%s1 + $0x230] sm:$0xff]
  %v92 = vld [vmem:[%s1 + $0x238] sm:$0xff]
  %v93 = vld [vmem:[%s1 + $0x240] sm:$0xff]
  %v94 = vld [vmem:[%s1 + $0x248] sm:$0xff]
  %v95 = vld [vmem:[%s1 + $0x250] sm:$0xff]
  %v96 = vld [vmem:[%s1 + $0x258] sm:$0xff]
  %v97 = vld [vmem:[%s1 + $0x260] sm:$0xff]
  %v98 = vld [vmem:[%s1 + $0x268] sm:$0xff]
  %v99 = vld [vmem:[%s1 + $0x270] sm:$0xff]
  %v100 = vld [vmem:[%s1 + $0x278] sm:$0xff]
  %v101 = vld [vmem:[%s1 + $0x280] sm:$0xff]
  %v102 = vld [vmem:[%s1 + $0x288] sm:$0xff]
  %v103 = vld [vmem:[%s1 + $0x290] sm:$0xff]
  %v104 = vld [vmem:[%s1 + $0x298] sm:$0xff]
  %v105 = vld [vmem:[%s1 + $0x2a0] sm:$0xff]
  %v106 = vld [vmem:[%s1 + $0x2a8] sm:$0xff]
  %v107 = vld [vmem:[%s1 + $0x2b0] sm:$0xff]
  %v108 = vld [vmem:[%s1 + $0x2b8] sm:$0xff]
  %v109 = vld [vmem:[%s1 + $0x2c0] sm:$0xff]
  %v110 = vld [vmem:[%s1 + $0x2c8] sm:$0xff]
  %v111 = vld [vmem:[%s1 + $0x2d0] sm:$0xff]
  %v112 = vld [vmem:[%s1 + $0x2d8] sm:$0xff]
  %v113 = vld [vmem:[%s1 + $0x2e0] sm:$0xff]
  %v114 = vld [vmem:[%s1 + $0x2e8] sm:$0xff]
  %v115 = vld [vmem:[%s1 + $0x2f0] sm:$0xff]
  %v116 = vld [vmem:[%s1 + $0x2f8] sm:$0xff]
  %v117 = vld [vmem:[%s1 + $0x300] sm:$0xff]
  %v118 = vld [vmem:[%s1 + $0x308] sm:$0xff]
  %v119 = vld [vmem:[%s1 + $0x310] sm:$0xff]
  %v120 = vld [vmem:[%s1 + $0x318] sm:$0xff]
  %v121 = vld [vmem:[%s1 + $0x320] sm:$0xff]
  %v122 = vld [vmem:[%s1 + $0x328] sm:$0xff]
  %v123 = vld [vmem:[%s1 + $0x330] sm:$0xff]
  %v124 = vld [vmem:[%s1 + $0x338] sm:$0xff]
  %v125 = vld [vmem:[%s1 + $0x340] sm:$0xff]
  %v126 = vld [vmem:[%s1 + $0x348] sm:$0xff]
  %v127 = vld [vmem:[%s1 + $0x350] sm:$0xff]
  %v128 = vld [vmem:[%s1 + $0x358] sm:$0xff]
  %v129 = vld [vmem:[%s1 + $0x360] sm:$0xff]
  %v130 = vld [vmem:[%s1 + $0x368] sm:$0xff]
  %v131 = vld [vmem:[%s1 + $0x370] sm:$0xff]
  %v132 = vld [vmem:[%s1 + $0x378] sm:$0xff]
  %v133 = vld [vmem:[%s1 + $0x380] sm:$0xff]
  %v134 = vld [vmem:[%s1 + $0x388] sm:$0xff]
  %v135 = vld [vmem:[%s1 + $0x390] sm:$0xff]
  %v136 = vld [vmem:[%s1 + $0x398] sm:$0xff]
  %v137 = vld [vmem:[%s1 + $0x3a0] sm:$0xff]
  %v138 = vld [vmem:[%s1 + $0x3a8] sm:$0xff]
  %v139 = vld [vmem:[%s1 + $0x3b0] sm:$0xff]
  %v140 = vld [vmem:[%s1 + $0x3b8] sm:$0xff]
  %v141 = vld [vmem:[%s1 + $0x3c0] sm:$0xff]
  %v142 = vld [vmem:[%s1 + $0x3c8] sm:$0xff]
  %v143 = vld [vmem:[%s1 + $0x3d0] sm:$0xff]
  %v144 = vld [vmem:[%s1 + $0x3d8] sm:$0xff]
  %v145 = vld [vmem:[%s1 + $0x3e0] sm:$0xff]
  %v146 = vld [vmem:[%s1 + $0x3e8] sm:$0xff]
  %v147 = vld [vmem:[%s1 + $0x3f0] sm:$0xff]
  %v148 = vld [vmem:[%s1 + $0x3f8] sm:$0xff]
  %v149 = vld [vmem:[%s1 + $0x400] sm:$0xff]
  %v150 = vld [vmem:[%s1 + $0x408] sm:$0xff]
  %v151 = vld [vmem:[%s1 + $0x410] sm:$0xff]
  %v152 = vld [vmem:[%s1 + $0x418] sm:$0xff]
  %v153 = vld [vmem:[%s1 + $0x420] sm:$0xff]
  %v154 = vld [vmem:[%s1 + $0x428] sm:$0xff]
  %v155 = vld [vmem:[%s1 + $0x430] sm:$0xff]
  %v156 = vld [vmem:[%s1 + $0x438] sm:$0xff]
  %v157 = vld [vmem:[%s1 + $0x440] sm:$0xff]
  %v158 = vld [vmem:[%s1 + $0x448] sm:$0xff]
  %v159 = vld [vmem:[%s1 + $0x450] sm:$0xff]
  %v160 = vld [vmem:[%s1 + $0x458] sm:$0xff]
  %v161 = vld [vmem:[%s1 + $0x460] sm:$0xff]
  %v162 = vld [vmem:[%s1 + $0x468] sm:$0xff]
  %v163 = vld [vmem:[%s1 + $0x470] sm:$0xff]
  %v164 = vld [vmem:[%s1 + $0x478] sm:$0xff]
  %v165 = vld [vmem:[%s1 + $0x480] sm:$0xff]
  %v166 = vld [vmem:[%s1 + $0x488] sm:$0xff]
  %v167 = vld [vmem:[%s1 + $0x490] sm:$0xff]
  %v168 = vld [vmem:[%s1 + $0x498] sm:$0xff]
  %v169 = vld [vmem:[%s1 + $0x4a0] sm:$0xff]
  %v170 = vld [vmem:[%s1 + $0x4a8] sm:$0xff]
  %v171 = vld [vmem:[%s1 + $0x4b0] sm:$0xff]
  %v172 = vld [vmem:[%s1 + $0x4b8] sm:$0xff]
  %v173 = vld [vmem:[%s1 + $0x4c0] sm:$0xff]
  %v174 = vld [vmem:[%s1 + $0x4c8] sm:$0xff]
  %v175 = vld [vmem:[%s1 + $0x4d0] sm:$0xff]
  %v176 = vld [vmem:[%s1 + $0x4d8] sm:$0xff]
  %v177 = vld [vmem:[%s1 + $0x4e0] sm:$0xff]
  %v178 = vld [vmem:[%s1 + $0x4e8] sm:$0xff]
  %v179 = vld [vmem:[%s1 + $0x4f0] sm:$0xff]
  %v180 = vld [vmem:[%s1 + $0x4f8] sm:$0xff]
  %v181 = vld [vmem:[%s1 + $0x500] sm:$0xff]
  %v182 = vld [vmem:[%s1 + $0x508] sm:$0xff]
  %v183 = vld [vmem:[%s1 + $0x510] sm:$0xff]
  %v184 = vld [vmem:[%s1 + $0x518] sm:$0xff]
  %v185 = vld [vmem:[%s1 + $0x520] sm:$0xff]
  %v186 = vld [vmem:[%s1 + $0x528] sm:$0xff]
  %v187 = vld [vmem:[%s1 + $0x530] sm:$0xff]
  %v188 = vld [vmem:[%s1 + $0x538] sm:$0xff]
  %v189 = vld [vmem:[%s1 + $0x540] sm:$0xff]
  %v190 = vld [vmem:[%s1 + $0x548] sm:$0xff]
  %v191 = vld [vmem:[%s1 + $0x550] sm:$0xff]
  %v192 = vld [vmem:[%s1 + $0x558] sm:$0xff]
  %v193 = vld [vmem:[%s1 + $0x560] sm:$0xff]
  %v194 = vld [vmem:[%s1 + $0x568] sm:$0xff]
  %v195 = vld [vmem:[%s1 + $0x570] sm:$0xff]
  %v196 = vld [vmem:[%s1 + $0x578] sm:$0xff]
  %v197 = vld [vmem:[%s1 + $0x580] sm:$0xff]
  %v198 = vld [vmem:[%s1 + $0x588] sm:$0xff]
  %v199 = vld [vmem:[%s1 + $0x590] sm:$0xff]
  %v200 = vld [vmem:[%s1 + $0x598] sm:$0xff]
  %v201 = vld [vmem:[%s1 + $0x5a0] sm:$0xff]
  %v202 = vld [vmem:[%s1 + $0x5a8] sm:$0xff]
  %v203 = vld [vmem:[%s1 + $0x5b0] sm:$0xff]
  %v204 = vld [vmem:[%s1 + $0x5b8] sm:$0xff]
  %v205 = vld [vmem:[%s1 + $0x5c0] sm:$0xff]
  %v206 = vld [vmem:[%s1 + $0x5c8] sm:$0xff]
  %v207 = vld [vmem:[%s1 + $0x5d0] sm:$0xff]
  %v208 = vld [vmem:[%s1 + $0x5d8] sm:$0xff]
  %v209 = vld [vmem:[%s1 + $0x5e0] sm:$0xff]
  %v210 = vld [vmem:[%s1 + $0x5e8] sm:$0xff]
  %v211 = vld [vmem:[%s1 + $0x5f0] sm:$0xff]
  %v212 = vld [vmem:[%s1 + $0x5f8] sm:$0xff]
  %v213 = vld [vmem:[%s1 + $0x600] sm:$0xff]
  %v214 = vld [vmem:[%s1 + $0x608] sm:$0xff]
  %v215 = vld [vmem:[%s1 + $0x610] sm:$0xff]
  %v216 = vld [vmem:[%s1 + $0x618] sm:$0xff]
  %v217 = vld [vmem:[%s1 + $0x620] sm:$0xff]
  %v218 = vld [vmem:[%s1 + $0x628] sm:$0xff]
  %v219 = vld [vmem:[%s1 + $0x630] sm:$0xff]
  %v220 = vld [vmem:[%s1 + $0x638] sm:$0xff]
  %v221 = vld [vmem:[%s1 + $0x640] sm:$0xff]
  %v222 = vld [vmem:[%s1 + $0x648] sm:$0xff]
  %v223 = vld [vmem:[%s1 + $0x650] sm:$0xff]
  %v224 = vld [vmem:[%s1 + $0x658] sm:$0xff]
  %v225 = vld [vmem:[%s1 + $0x660] sm:$0xff]
  %v226 = vld [vmem:[%s1 + $0x668] sm:$0xff]
  %v227 = vld [vmem:[%s1 + $0x670] sm:$0xff]
  %v228 = vld [vmem:[%s1 + $0x678] sm:$0xff]
  %v229 = vld [vmem:[%s1 + $0x680] sm:$0xff]
  %v230 = vld [vmem:[%s1 + $0x688] sm:$0xff]
  %v231 = vld [vmem:[%s1 + $0x690] sm:$0xff]
  %v232 = vld [vmem:[%s1 + $0x698] sm:$0xff]
  %v233 = vld [vmem:[%s1 + $0x6a0] sm:$0xff]
  %v234 = vld [vmem:[%s1 + $0x6a8] sm:$0xff]
  %v235 = vld [vmem:[%s1 + $0x6b0] sm:$0xff]
  %v236 = vld [vmem:[%s1 + $0x6b8] sm:$0xff]
  %v237 = vld [vmem:[%s1 + $0x6c0] sm:$0xff]
  %v238 = vld [vmem:[%s1 + $0x6c8] sm:$0xff]
  %v239 = vld [vmem:[%s1 + $0x6d0] sm:$0xff]
  %v240 = vld [vmem:[%s1 + $0x6d8] sm:$0xff]
  %v241 = vld [vmem:[%s1 + $0x6e0] sm:$0xff]
  %v242 = vld [vmem:[%s1 + $0x6e8] sm:$0xff]
  %v243 = vld [vmem:[%s1 + $0x6f0] sm:$0xff]
  %v244 = vld [vmem:[%s1 + $0x6f8] sm:$0xff]
  %v245 = vld [vmem:[%s1 + $0x700] sm:$0xff]
  %v246 = vld [vmem:[%s1 + $0x708] sm:$0xff]
  %v247 = vld [vmem:[%s1 + $0x710] sm:$0xff]
  %v248 = vld [vmem:[%s1 + $0x718] sm:$0xff]
  %v249 = vld [vmem:[%s1 + $0x720] sm:$0xff]
  %v250 = vld [vmem:[%s1 + $0x728] sm:$0xff]
  %v251 = vld [vmem:[%s1 + $0x730] sm:$0xff]
  %v252 = vld [vmem:[%s1 + $0x738] sm:$0xff]
  %v253 = vld [vmem:[%s1 + $0x740] sm:$0xff]
  %v254 = vld [vmem:[%s1 + $0x748] sm:$0xff]
  %v255 = vld [vmem:[%s1 + $0x750] sm:$0xff]
  %v256 = vld [vmem:[%s1 + $0x758] sm:$0xff]
  %v257 = vld [vmem:[%s1 + $0x760] sm:$0xff]
  %v258 = vld [vmem:[%s1 + $0x768] sm:$0xff]
  %v259 = vld [vmem:[%s1 + $0x770] sm:$0xff]
  %v260 = vld [vmem:[%s1 + $0x778] sm:$0xff]
  %v261 = vld [vmem:[%s1 + $0x780] sm:$0xff]
  %v262 = vld [vmem:[%s1 + $0x788] sm:$0xff]
  %v263 = vld [vmem:[%s1 + $0x790] sm:$0xff]
  %v264 = vld [vmem:[%s1 + $0x798] sm:$0xff]
  %v265 = vld [vmem:[%s1 + $0x7a0] sm:$0xff]
  %v266 = vld [vmem:[%s1 + $0x7a8] sm:$0xff]
  %v267 = vld [vmem:[%s1 + $0x7b0] sm:$0xff]
  %v268 = vld [vmem:[%s1 + $0x7b8] sm:$0xff]
  %v269 = vld [vmem:[%s1 + $0x7c0] sm:$0xff]
  %v270 = vld [vmem:[%s1 + $0x7c8] sm:$0xff]
  %v271 = vld [vmem:[%s1 + $0x7d0] sm:$0xff]
  %v272 = vld [vmem:[%s1 + $0x7d8] sm:$0xff]
  %v273 = vld [vmem:[%s1 + $0x7e0] sm:$0xff]
  %v274 = vld [vmem:[%s1 + $0x7e8] sm:$0xff]
  %v275 = vld [vmem:[%s1 + $0x7f0] sm:$0xff]
  %v276 = vld [vmem:[%s1 + $0x7f8] sm:$0xff]
  %v277 = vld [vmem:[%s1 + $0x800] sm:$0xff]
  %v278 = vld [vmem:[%s1 + $0x808] sm:$0xff]
  %v279 = vld [vmem:[%s1 + $0x810] sm:$0xff]
  %v280 = vld [vmem:[%s1 + $0x818] sm:$0xff]
  %v281 = vld [vmem:[%s1 + $0x820] sm:$0xff]
  %v282 = vld [vmem:[%s1 + $0x828] sm:$0xff]
  %v283 = vld [vmem:[%s1 + $0x830] sm:$0xff]
  %v284 = vld [vmem:[%s1 + $0x838] sm:$0xff]
  %v285 = vld [vmem:[%s1 + $0x840] sm:$0xff]
  %v286 = vld [vmem:[%s1 + $0x848] sm:$0xff]
  %v287 = vld [vmem:[%s1 + $0x850] sm:$0xff]
  %v288 = vld [vmem:[%s1 + $0x858] sm:$0xff]
  %v289 = vld [vmem:[%s1 + $0x860] sm:$0xff]
  %v290 = vld [vmem:[%s1 + $0x868] sm:$0xff]
  %v291 = vld [vmem:[%s1 + $0x870] sm:$0xff]
  %v292 = vld [vmem:[%s1 + $0x878] sm:$0xff]
  %v293 = vld [vmem:[%s1 + $0x880] sm:$0xff]
  %v294 = vld [vmem:[%s1 + $0x888] sm:$0xff]
  %v295 = vld [vmem:[%s1 + $0x890] sm:$0xff]
  %v296 = vld [vmem:[%s1 + $0x898] sm:$0xff]
  %v297 = vld [vmem:[%s1 + $0x8a0] sm:$0xff]
  %v298 = vld [vmem:[%s1 + $0x8a8] sm:$0xff]
  %v299 = vld [vmem:[%s1 + $0x8b0] sm:$0xff]
  %v300 = vld [vmem:[%s1 + $0x8b8] sm:$0xff]
  %v301 = vld [vmem:[%s1 + $0x8c0] sm:$0xff]
  %v302 = vld [vmem:[%s1 + $0x8c8] sm:$0xff]
  %v303 = vld [vmem:[%s1 + $0x8d0] sm:$0xff]
  %v304 = vld [vmem:[%s1 + $0x8d8] sm:$0xff]
  %v305 = vld [vmem:[%s1 + $0x8e0] sm:$0xff]
  %v306 = vld [vmem:[%s1 + $0x8e8] sm:$0xff]
  %v307 = vld [vmem:[%s1 + $0x8f0] sm:$0xff]
  %v308 = vld [vmem:[%s1 + $0x8f8] sm:$0xff]
  %v309 = vld [vmem:[%s1 + $0x900] sm:$0xff]
  %v310 = vld [vmem:[%s1 + $0x908] sm:$0xff]
  %v311 = vld [vmem:[%s1 + $0x910] sm:$0xff]
  %v312 = vld [vmem:[%s1 + $0x918] sm:$0xff]
  %v313 = vld [vmem:[%s1 + $0x920] sm:$0xff]
  %v314 = vld [vmem:[%s1 + $0x928] sm:$0xff]
  %v315 = vld [vmem:[%s1 + $0x930] sm:$0xff]
  %v316 = vld [vmem:[%s1 + $0x938] sm:$0xff]
  %v317 = vld [vmem:[%s1 + $0x940] sm:$0xff]
  %v318 = vld [vmem:[%s1 + $0x948] sm:$0xff]
  %v319 = vld [vmem:[%s1 + $0x950] sm:$0xff]
  %v320 = vld [vmem:[%s1 + $0x958] sm:$0xff]
  %v321 = vld [vmem:[%s1 + $0x960] sm:$0xff]
  %v322 = vld [vmem:[%s1 + $0x968] sm:$0xff]
  %v323 = vld [vmem:[%s1 + $0x970] sm:$0xff]
  %v324 = vld [vmem:[%s1 + $0x978] sm:$0xff]
  %v325 = vld [vmem:[%s1 + $0x980] sm:$0xff]
  %v326 = vld [vmem:[%s1 + $0x988] sm:$0xff]
  %v327 = vld [vmem:[%s1 + $0x990] sm:$0xff]
  %v328 = vld [vmem:[%s1 + $0x998] sm:$0xff]
  %v329 = vld [vmem:[%s1 + $0x9a0] sm:$0xff]
  %v330 = vld [vmem:[%s1 + $0x9a8] sm:$0xff]
  %v331 = vld [vmem:[%s1 + $0x9b0] sm:$0xff]
  %v332 = vld [vmem:[%s1 + $0x9b8] sm:$0xff]
  %v333 = vld [vmem:[%s1 + $0x9c0] sm:$0xff]
  %v334 = vld [vmem:[%s1 + $0x9c8] sm:$0xff]
  %v335 = vld [vmem:[%s1 + $0x9d0] sm:$0xff]
  %v336 = vld [vmem:[%s1 + $0x9d8] sm:$0xff]
  %v337 = vld [vmem:[%s1 + $0x9e0] sm:$0xff]
  %v338 = vld [vmem:[%s1 + $0x9e8] sm:$0xff]
  %v339 = vld [vmem:[%s1 + $0x9f0] sm:$0xff]
  %v340 = vld [vmem:[%s1 + $0x9f8] sm:$0xff]
  %v341 = vld [vmem:[%s1 + $0xa00] sm:$0xff]
  %v342 = vld [vmem:[%s1 + $0xa08] sm:$0xff]
  %v343 = vld [vmem:[%s1 + $0xa10] sm:$0xff]
  %v344 = vld [vmem:[%s1 + $0xa18] sm:$0xff]
  %v345 = vld [vmem:[%s1 + $0xa20] sm:$0xff]
  %v346 = vld [vmem:[%s1 + $0xa28] sm:$0xff]
  %v347 = vld [vmem:[%s1 + $0xa30] sm:$0xff]
  %v348 = vld [vmem:[%s1 + $0xa38] sm:$0xff]
  %v349 = vld [vmem:[%s1 + $0xa40] sm:$0xff]
  %v350 = vld [vmem:[%s1 + $0xa48] sm:$0xff]
  %v351 = vld [vmem:[%s1 + $0xa50] sm:$0xff]
  %v352 = vld [vmem:[%s1 + $0xa58] sm:$0xff]
  %v353 = vld [vmem:[%s1 + $0xa60] sm:$0xff]
  %v354 = vld [vmem:[%s1 + $0xa68] sm:$0xff]
  %v355 = vld [vmem:[%s1 + $0xa70] sm:$0xff]
  %v356 = vld [vmem:[%s1 + $0xa78] sm:$0xff]
  %v357 = vld [vmem:[%s1 + $0xa80] sm:$0xff]
  %v358 = vld [vmem:[%s1 + $0xa88] sm:$0xff]
  %v359 = vld [vmem:[%s1 + $0xa90] sm:$0xff]
  %v360 = vld [vmem:[%s1 + $0xa98] sm:$0xff]
  %v361 = vld [vmem:[%s1 + $0xaa0] sm:$0xff]
  %v362 = vld [vmem:[%s1 + $0xaa8] sm:$0xff]
  %v363 = vld [vmem:[%s1 + $0xab0] sm:$0xff]
  %v364 = vld [vmem:[%s1 + $0xab8] sm:$0xff]
  %v365 = vld [vmem:[%s1 + $0xac0] sm:$0xff]
  %v366 = vld [vmem:[%s1 + $0xac8] sm:$0xff]
  %v367 = vld [vmem:[%s1 + $0xad0] sm:$0xff]
  %v368 = vld [vmem:[%s1 + $0xad8] sm:$0xff]
  %v369 = vld [vmem:[%s1 + $0xae0] sm:$0xff]
  %v370 = vld [vmem:[%s1 + $0xae8] sm:$0xff]
  %v371 = vld [vmem:[%s1 + $0xaf0] sm:$0xff]
  %v372 = vld [vmem:[%s1 + $0xaf8] sm:$0xff]
  %v373 = vld [vmem:[%s1 + $0xb00] sm:$0xff]
  %v374 = vld [vmem:[%s1 + $0xb08] sm:$0xff]
  %v375 = vld [vmem:[%s1 + $0xb10] sm:$0xff]
  %v376 = vld [vmem:[%s1 + $0xb18] sm:$0xff]
  %v377 = vld [vmem:[%s1 + $0xb20] sm:$0xff]
  %v378 = vld [vmem:[%s1 + $0xb28] sm:$0xff]
  %v379 = vld [vmem:[%s1 + $0xb30] sm:$0xff]
  %v380 = vld [vmem:[%s1 + $0xb38] sm:$0xff]
  %v381 = vld [vmem:[%s1 + $0xb40] sm:$0xff]
  %v382 = vld [vmem:[%s1 + $0xb48] sm:$0xff]
  %v383 = vld [vmem:[%s1 + $0xb50] sm:$0xff]
  %v384 = vld [vmem:[%s1 + $0xb58] sm:$0xff]
  %v385 = vld [vmem:[%s1 + $0xb60] sm:$0xff]
  %v386 = vld [vmem:[%s1 + $0xb68] sm:$0xff]
  %v387 = vld [vmem:[%s1 + $0xb70] sm:$0xff]
  %v388 = vld [vmem:[%s1 + $0xb78] sm:$0xff]
  %v389 = vld [vmem:[%s1 + $0xb80] sm:$0xff]
  %v390 = vld [vmem:[%s1 + $0xb88] sm:$0xff]
  %v391 = vld [vmem:[%s1 + $0xb90] sm:$0xff]
  %v392 = vld [vmem:[%s1 + $0xb98] sm:$0xff]
  %v393 = vld [vmem:[%s1 + $0xba0] sm:$0xff]
  %v394 = vld [vmem:[%s1 + $0xba8] sm:$0xff]
  %v395 = vld [vmem:[%s1 + $0xbb0] sm:$0xff]
  %v396 = vld [vmem:[%s1 + $0xbb8] sm:$0xff]
  %v397 = vld [vmem:[%s1 + $0xbc0] sm:$0xff]
  %v398 = vld [vmem:[%s1 + $0xbc8] sm:$0xff]
  %v399 = vld [vmem:[%s1 + $0xbd0] sm:$0xff]
  %v400 = vld [vmem:[%s1 + $0xbd8] sm:$0xff]
  %v401 = vld [vmem:[%s1 + $0xbe0] sm:$0xff]
  %v402 = vld [vmem:[%s1 + $0xbe8] sm:$0xff]
  %v403 = vld [vmem:[%s1 + $0xbf0] sm:$0xff]
  %v404 = vld [vmem:[%s1 + $0xbf8] sm:$0xff]
  %vm405 = vcmask 523264
  %v407 = vsel %vm405, %v18, 0
  %v410 = vsel %vm405, %v20, 0
  %412 = vmatprep.subr.mxu0 %v22
  %413 = vmatpush1.msra.mxu0 %v21
  %414 = vmatprep.subr.mxu0 %v38
  %415 = vmatpush1.msra.mxu0 %v37
  %416 = vmatprep.subr.mxu0 %v54
  %417 = vmatpush1.msra.mxu0 %v53
  %418 = vmatprep.subr.mxu0 %v70
  %419 = vmatpush1.msra.mxu0 %v69
  %420 = vmatprep.subr.mxu0 %v86
  %421 = vmatpush1.msra.mxu0 %v85
  %422 = vmatprep.subr.mxu0 %v102
  %423 = vmatpush1.msra.mxu0 %v101
  %424 = vmatprep.subr.mxu0 %v118
  %425 = vmatpush1.msra.mxu0 %v117
  %426 = vmatprep.subr.mxu0 %v134
  %427 = vmatpush1.msra.mxu0 %v133
  %428 = vmatprep.subr.mxu0 %v150
  %429 = vmatpush1.msra.mxu0 %v149
  %430 = vmatprep.subr.mxu0 %v166
  %431 = vmatpush1.msra.mxu0 %v165
  %432 = vmatprep.subr.mxu0 %v182
  %433 = vmatpush1.msra.mxu0 %v181
  %434 = vmatprep.subr.mxu0 %v198
  %435 = vmatpush1.msra.mxu0 %v197
  %436 = vmatprep.subr.mxu0 %v214
  %437 = vmatpush1.msra.mxu0 %v213
  %438 = vmatprep.subr.mxu0 %v230
  %439 = vmatpush1.msra.mxu0 %v229
  %440 = vmatprep.subr.mxu0 %v246
  %441 = vmatpush1.msra.mxu0 %v245
  %442 = vmatprep.subr.mxu0 %v262
  %443 = vmatpush1.msra.mxu0 %v261
  %444 = vmatprep.subr.mxu0 %v278
  %445 = vmatpush1.msra.mxu0 %v277
  %446 = vmatprep.subr.mxu0 %v294
  %447 = vmatpush1.msra.mxu0 %v293
  %448 = vmatprep.subr.mxu0 %v310
  %449 = vmatpush1.msra.mxu0 %v309
  %450 = vmatprep.subr.mxu0 %v326
  %451 = vmatpush1.msra.mxu0 %v325
  %452 = vmatprep.subr.mxu0 %v342
  %453 = vmatpush1.msra.mxu0 %v341
  %454 = vmatprep.subr.mxu0 %v358
  %455 = vmatpush1.msra.mxu0 %v357
  %456 = vmatprep.subr.mxu0 %v374
  %457 = vmatpush1.msra.mxu0 %v373
  %458 = vmatprep.subr.mxu0 %v390
  %459 = vmatpush1.msra.mxu0 %v389
  %460 = vmatprep.subr.mxu0 0.0
  %461 = vmatpush1.msra.mxu0 0.0
  %462 = vmatprep.subr.mxu0 0.0
  %463 = vmatpush1.msra.mxu0 0.0
  %464 = vmatprep.subr.mxu0 0.0
  %465 = vmatpush1.msra.mxu0 0.0
  %466 = vmatprep.subr.mxu0 0.0
  %467 = vmatpush1.msra.mxu0 0.0
  %468 = vmatprep.subr.mxu0 0.0
  %469 = vmatpush1.msra.mxu0 0.0
  %470 = vmatprep.subr.mxu0 0.0
  %471 = vmatpush1.msra.mxu0 0.0
  %472 = vmatprep.subr.mxu0 0.0
  %473 = vmatpush1.msra.mxu0 0.0
  %474 = vmatprep.subr.mxu0 0.0
  %475 = vmatpush1.msra.mxu0 0.0
  %476 = vmatprep.mubr.f32.mxu0 %v407
  %477 = vmatmul.mubr.f32.gmra.mrb[0].mxu0 %v17
  %v478 = vpop.f32.mrb[0].mxu0
  %v479 = vadd.f32 0.0, %v478
  %v480 = vpop.f32.mrb[0].mxu0
  %v481 = vadd.f32 0.0, %v480
  %482 = vmatprep.mubr.f32.mxu0 %v410
  %483 = vmatmul.mubr.f32.gmra.mrb[0].mxu0 %v19
  %v484 = vpop.f32.mrb[0].mxu0
  %v485 = vadd.f32 0.0, %v484
  %v486 = vpop.f32.mrb[0].mxu0
  %v487 = vadd.f32 0.0, %v486
  %488 = vdwg.mxu0
  %489 = vmatprep.subr.mxu0 %v24
  %490 = vmatpush1.msra.mxu0 %v23
  %491 = vmatprep.subr.mxu0 %v40
  %492 = vmatpush1.msra.mxu0 %v39
  %493 = vmatprep.subr.mxu0 %v56
  %494 = vmatpush1.msra.mxu0 %v55
  %495 = vmatprep.subr.mxu0 %v72
  %496 = vmatpush1.msra.mxu0 %v71
  %497 = vmatprep.subr.mxu0 %v88
  %498 = vmatpush1.msra.mxu0 %v87
  %499 = vmatprep.subr.mxu0 %v104
  %500 = vmatpush1.msra.mxu0 %v103
  %501 = vmatprep.subr.mxu0 %v120
  %502 = vmatpush1.msra.mxu0 %v119
  %503 = vmatprep.subr.mxu0 %v136
  %504 = vmatpush1.msra.mxu0 %v135
  %505 = vmatprep.subr.mxu0 %v152
  %506 = vmatpush1.msra.mxu0 %v151
  %507 = vmatprep.subr.mxu0 %v168
  %508 = vmatpush1.msra.mxu0 %v167
  %509 = vmatprep.subr.mxu0 %v184
  %510 = vmatpush1.msra.mxu0 %v183
  %511 = vmatprep.subr.mxu0 %v200
  %512 = vmatpush1.msra.mxu0 %v199
  %513 = vmatprep.subr.mxu0 %v216
  %514 = vmatpush1.msra.mxu0 %v215
  %515 = vmatprep.subr.mxu0 %v232
  %516 = vmatpush1.msra.mxu0 %v231
  %517 = vmatprep.subr.mxu0 %v248
  %518 = vmatpush1.msra.mxu0 %v247
  %519 = vmatprep.subr.mxu0 %v264
  %520 = vmatpush1.msra.mxu0 %v263
  %521 = vmatprep.subr.mxu0 %v280
  %522 = vmatpush1.msra.mxu0 %v279
  %523 = vmatprep.subr.mxu0 %v296
  %524 = vmatpush1.msra.mxu0 %v295
  %525 = vmatprep.subr.mxu0 %v312
  %526 = vmatpush1.msra.mxu0 %v311
  %527 = vmatprep.subr.mxu0 %v328
  %528 = vmatpush1.msra.mxu0 %v327
  %529 = vmatprep.subr.mxu0 %v344
  %530 = vmatpush1.msra.mxu0 %v343
  %531 = vmatprep.subr.mxu0 %v360
  %532 = vmatpush1.msra.mxu0 %v359
  %533 = vmatprep.subr.mxu0 %v376
  %534 = vmatpush1.msra.mxu0 %v375
  %535 = vmatprep.subr.mxu0 %v392
  %536 = vmatpush1.msra.mxu0 %v391
  %537 = vmatprep.subr.mxu0 0.0
  %538 = vmatpush1.msra.mxu0 0.0
  %539 = vmatprep.subr.mxu0 0.0
  %540 = vmatpush1.msra.mxu0 0.0
  %541 = vmatprep.subr.mxu0 0.0
  %542 = vmatpush1.msra.mxu0 0.0
  %543 = vmatprep.subr.mxu0 0.0
  %544 = vmatpush1.msra.mxu0 0.0
  %545 = vmatprep.subr.mxu0 0.0
  %546 = vmatpush1.msra.mxu0 0.0
  %547 = vmatprep.subr.mxu0 0.0
  %548 = vmatpush1.msra.mxu0 0.0
  %549 = vmatprep.subr.mxu0 0.0
  %550 = vmatpush1.msra.mxu0 0.0
  %551 = vmatprep.subr.mxu0 0.0
  %552 = vmatpush1.msra.mxu0 0.0
  %553 = vmatprep.mubr.f32.mxu0 %v407
  %554 = vmatmul.mubr.f32.gmra.mrb[0].mxu0 %v17
  %v555 = vpop.f32.mrb[0].mxu0
  %v556 = vadd.f32 0.0, %v555
  %v557 = vpop.f32.mrb[0].mxu0
  %v558 = vadd.f32 0.0, %v557
  %559 = vmatprep.mubr.f32.mxu0 %v410
  %560 = vmatmul.mubr.f32.gmra.mrb[0].mxu0 %v19
  %v561 = vpop.f32.mrb[0].mxu0
  %v562 = vadd.f32 0.0, %v561
  %v563 = vpop.f32.mrb[0].mxu0
  %v564 = vadd.f32 0.0, %v563
  %565 = vdwg.mxu0
  %566 = vmatprep.subr.mxu0 %v26
  %567 = vmatpush1.msra.mxu0 %v25
  %568 = vmatprep.subr.mxu0 %v42
  %569 = vmatpush1.msra.mxu0 %v41
  %570 = vmatprep.subr.mxu0 %v58
  %571 = vmatpush1.msra.mxu0 %v57
  %572 = vmatprep.subr.mxu0 %v74
  %573 = vmatpush1.msra.mxu0 %v73
  %574 = vmatprep.subr.mxu0 %v90
  %575 = vmatpush1.msra.mxu0 %v89
  %576 = vmatprep.subr.mxu0 %v106
  %577 = vmatpush1.msra.mxu0 %v105
  %578 = vmatprep.subr.mxu0 %v122
  %579 = vmatpush1.msra.mxu0 %v121
  %580 = vmatprep.subr.mxu0 %v138
  %581 = vmatpush1.msra.mxu0 %v137
  %582 = vmatprep.subr.mxu0 %v154
  %583 = vmatpush1.msra.mxu0 %v153
  %584 = vmatprep.subr.mxu0 %v170
  %585 = vmatpush1.msra.mxu0 %v169
  %586 = vmatprep.subr.mxu0 %v186
  %587 = vmatpush1.msra.mxu0 %v185
  %588 = vmatprep.subr.mxu0 %v202
  %589 = vmatpush1.msra.mxu0 %v201
  %590 = vmatprep.subr.mxu0 %v218
  %591 = vmatpush1.msra.mxu0 %v217
  %592 = vmatprep.subr.mxu0 %v234
  %593 = vmatpush1.msra.mxu0 %v233
  %594 = vmatprep.subr.mxu0 %v250
  %595 = vmatpush1.msra.mxu0 %v249
  %596 = vmatprep.subr.mxu0 %v266
  %597 = vmatpush1.msra.mxu0 %v265
  %598 = vmatprep.subr.mxu0 %v282
  %599 = vmatpush1.msra.mxu0 %v281
  %600 = vmatprep.subr.mxu0 %v298
  %601 = vmatpush1.msra.mxu0 %v297
  %602 = vmatprep.subr.mxu0 %v314
  %603 = vmatpush1.msra.mxu0 %v313
  %604 = vmatprep.subr.mxu0 %v330
  %605 = vmatpush1.msra.mxu0 %v329
  %606 = vmatprep.subr.mxu0 %v346
  %607 = vmatpush1.msra.mxu0 %v345
  %608 = vmatprep.subr.mxu0 %v362
  %609 = vmatpush1.msra.mxu0 %v361
  %610 = vmatprep.subr.mxu0 %v378
  %611 = vmatpush1.msra.mxu0 %v377
  %612 = vmatprep.subr.mxu0 %v394
  %613 = vmatpush1.msra.mxu0 %v393
  %614 = vmatprep.subr.mxu0 0.0
  %615 = vmatpush1.msra.mxu0 0.0
  %616 = vmatprep.subr.mxu0 0.0
  %617 = vmatpush1.msra.mxu0 0.0
  %618 = vmatprep.subr.mxu0 0.0
  %619 = vmatpush1.msra.mxu0 0.0
  %620 = vmatprep.subr.mxu0 0.0
  %621 = vmatpush1.msra.mxu0 0.0
  %622 = vmatprep.subr.mxu0 0.0
  %623 = vmatpush1.msra.mxu0 0.0
  %624 = vmatprep.subr.mxu0 0.0
  %625 = vmatpush1.msra.mxu0 0.0
  %626 = vmatprep.subr.mxu0 0.0
  %627 = vmatpush1.msra.mxu0 0.0
  %628 = vmatprep.subr.mxu0 0.0
  %629 = vmatpush1.msra.mxu0 0.0
  %630 = vmatprep.mubr.f32.mxu0 %v407
  %631 = vmatmul.mubr.f32.gmra.mrb[0].mxu0 %v17
  %v632 = vpop.f32.mrb[0].mxu0
  %v633 = vadd.f32 0.0, %v632
  %v634 = vpop.f32.mrb[0].mxu0
  %v635 = vadd.f32 0.0, %v634
  %636 = vmatprep.mubr.f32.mxu0 %v410
  %637 = vmatmul.mubr.f32.gmra.mrb[0].mxu0 %v19
  %v638 = vpop.f32.mrb[0].mxu0
  %v639 = vadd.f32 0.0, %v638
  %v640 = vpop.f32.mrb[0].mxu0
  %v641 = vadd.f32 0.0, %v640
  %642 = vdwg.mxu0
  %643 = vmatprep.subr.mxu0 %v28
  %644 = vmatpush1.msra.mxu0 %v27
  %645 = vmatprep.subr.mxu0 %v44
  %646 = vmatpush1.msra.mxu0 %v43
  %647 = vmatprep.subr.mxu0 %v60
  %648 = vmatpush1.msra.mxu0 %v59
  %649 = vmatprep.subr.mxu0 %v76
  %650 = vmatpush1.msra.mxu0 %v75
  %651 = vmatprep.subr.mxu0 %v92
  %652 = vmatpush1.msra.mxu0 %v91
  %653 = vmatprep.subr.mxu0 %v108
  %654 = vmatpush1.msra.mxu0 %v107
  %655 = vmatprep.subr.mxu0 %v124
  %656 = vmatpush1.msra.mxu0 %v123
  %657 = vmatprep.subr.mxu0 %v140
  %658 = vmatpush1.msra.mxu0 %v139
  %659 = vmatprep.subr.mxu0 %v156
  %660 = vmatpush1.msra.mxu0 %v155
  %661 = vmatprep.subr.mxu0 %v172
  %662 = vmatpush1.msra.mxu0 %v171
  %663 = vmatprep.subr.mxu0 %v188
  %664 = vmatpush1.msra.mxu0 %v187
  %665 = vmatprep.subr.mxu0 %v204
  %666 = vmatpush1.msra.mxu0 %v203
  %667 = vmatprep.subr.mxu0 %v220
  %668 = vmatpush1.msra.mxu0 %v219
  %669 = vmatprep.subr.mxu0 %v236
  %670 = vmatpush1.msra.mxu0 %v235
  %671 = vmatprep.subr.mxu0 %v252
  %672 = vmatpush1.msra.mxu0 %v251
  %673 = vmatprep.subr.mxu0 %v268
  %674 = vmatpush1.msra.mxu0 %v267
  %675 = vmatprep.subr.mxu0 %v284
  %676 = vmatpush1.msra.mxu0 %v283
  %677 = vmatprep.subr.mxu0 %v300
  %678 = vmatpush1.msra.mxu0 %v299
  %679 = vmatprep.subr.mxu0 %v316
  %680 = vmatpush1.msra.mxu0 %v315
  %681 = vmatprep.subr.mxu0 %v332
  %682 = vmatpush1.msra.mxu0 %v331
  %683 = vmatprep.subr.mxu0 %v348
  %684 = vmatpush1.msra.mxu0 %v347
  %685 = vmatprep.subr.mxu0 %v364
  %686 = vmatpush1.msra.mxu0 %v363
  %687 = vmatprep.subr.mxu0 %v380
  %688 = vmatpush1.msra.mxu0 %v379
  %689 = vmatprep.subr.mxu0 %v396
  %690 = vmatpush1.msra.mxu0 %v395
  %691 = vmatprep.subr.mxu0 0.0
  %692 = vmatpush1.msra.mxu0 0.0
  %693 = vmatprep.subr.mxu0 0.0
  %694 = vmatpush1.msra.mxu0 0.0
  %695 = vmatprep.subr.mxu0 0.0
  %696 = vmatpush1.msra.mxu0 0.0
  %697 = vmatprep.subr.mxu0 0.0
  %698 = vmatpush1.msra.mxu0 0.0
  %699 = vmatprep.subr.mxu0 0.0
  %700 = vmatpush1.msra.mxu0 0.0
  %701 = vmatprep.subr.mxu0 0.0
  %702 = vmatpush1.msra.mxu0 0.0
  %703 = vmatprep.subr.mxu0 0.0
  %704 = vmatpush1.msra.mxu0 0.0
  %705 = vmatprep.subr.mxu0 0.0
  %706 = vmatpush1.msra.mxu0 0.0
  %707 = vmatprep.mubr.f32.mxu0 %v407
  %708 = vmatmul.mubr.f32.gmra.mrb[0].mxu0 %v17
  %v709 = vpop.f32.mrb[0].mxu0
  %v710 = vadd.f32 0.0, %v709
  %v711 = vpop.f32.mrb[0].mxu0
  %v712 = vadd.f32 0.0, %v711
  %713 = vmatprep.mubr.f32.mxu0 %v410
  %714 = vmatmul.mubr.f32.gmra.mrb[0].mxu0 %v19
  %v715 = vpop.f32.mrb[0].mxu0
  %v716 = vadd.f32 0.0, %v715
  %v717 = vpop.f32.mrb[0].mxu0
  %v718 = vadd.f32 0.0, %v717
  %719 = vdwg.mxu0
  %720 = vmatprep.subr.mxu0 %v30
  %721 = vmatpush1.msra.mxu0 %v29
  %722 = vmatprep.subr.mxu0 %v46
  %723 = vmatpush1.msra.mxu0 %v45
  %724 = vmatprep.subr.mxu0 %v62
  %725 = vmatpush1.msra.mxu0 %v61
  %726 = vmatprep.subr.mxu0 %v78
  %727 = vmatpush1.msra.mxu0 %v77
  %728 = vmatprep.subr.mxu0 %v94
  %729 = vmatpush1.msra.mxu0 %v93
  %730 = vmatprep.subr.mxu0 %v110
  %731 = vmatpush1.msra.mxu0 %v109
  %732 = vmatprep.subr.mxu0 %v126
  %733 = vmatpush1.msra.mxu0 %v125
  %734 = vmatprep.subr.mxu0 %v142
  %735 = vmatpush1.msra.mxu0 %v141
  %736 = vmatprep.subr.mxu0 %v158
  %737 = vmatpush1.msra.mxu0 %v157
  %738 = vmatprep.subr.mxu0 %v174
  %739 = vmatpush1.msra.mxu0 %v173
  %740 = vmatprep.subr.mxu0 %v190
  %741 = vmatpush1.msra.mxu0 %v189
  %742 = vmatprep.subr.mxu0 %v206
  %743 = vmatpush1.msra.mxu0 %v205
  %744 = vmatprep.subr.mxu0 %v222
  %745 = vmatpush1.msra.mxu0 %v221
  %746 = vmatprep.subr.mxu0 %v238
  %747 = vmatpush1.msra.mxu0 %v237
  %748 = vmatprep.subr.mxu0 %v254
  %749 = vmatpush1.msra.mxu0 %v253
  %750 = vmatprep.subr.mxu0 %v270
  %751 = vmatpush1.msra.mxu0 %v269
  %752 = vmatprep.subr.mxu0 %v286
  %753 = vmatpush1.msra.mxu0 %v285
  %754 = vmatprep.subr.mxu0 %v302
  %755 = vmatpush1.msra.mxu0 %v301
  %756 = vmatprep.subr.mxu0 %v318
  %757 = vmatpush1.msra.mxu0 %v317
  %758 = vmatprep.subr.mxu0 %v334
  %759 = vmatpush1.msra.mxu0 %v333
  %760 = vmatprep.subr.mxu0 %v350
  %761 = vmatpush1.msra.mxu0 %v349
  %762 = vmatprep.subr.mxu0 %v366
  %763 = vmatpush1.msra.mxu0 %v365
  %764 = vmatprep.subr.mxu0 %v382
  %765 = vmatpush1.msra.mxu0 %v381
  %766 = vmatprep.subr.mxu0 %v398
  %767 = vmatpush1.msra.mxu0 %v397
  %768 = vmatprep.subr.mxu0 0.0
  %769 = vmatpush1.msra.mxu0 0.0
  %770 = vmatprep.subr.mxu0 0.0
  %771 = vmatpush1.msra.mxu0 0.0
  %772 = vmatprep.subr.mxu0 0.0
  %773 = vmatpush1.msra.mxu0 0.0
  %774 = vmatprep.subr.mxu0 0.0
  %775 = vmatpush1.msra.mxu0 0.0
  %776 = vmatprep.subr.mxu0 0.0
  %777 = vmatpush1.msra.mxu0 0.0
  %778 = vmatprep.subr.mxu0 0.0
  %779 = vmatpush1.msra.mxu0 0.0
  %780 = vmatprep.subr.mxu0 0.0
  %781 = vmatpush1.msra.mxu0 0.0
  %782 = vmatprep.subr.mxu0 0.0
  %783 = vmatpush1.msra.mxu0 0.0
  %784 = vmatprep.mubr.f32.mxu0 %v407
  %785 = vmatmul.mubr.f32.gmra.mrb[0].mxu0 %v17
  %v786 = vpop.f32.mrb[0].mxu0
  %v787 = vadd.f32 0.0, %v786
  %v788 = vpop.f32.mrb[0].mxu0
  %v789 = vadd.f32 0.0, %v788
  %790 = vmatprep.mubr.f32.mxu0 %v410
  %791 = vmatmul.mubr.f32.gmra.mrb[0].mxu0 %v19
  %v792 = vpop.f32.mrb[0].mxu0
  %v793 = vadd.f32 0.0, %v792
  %v794 = vpop.f32.mrb[0].mxu0
  %v795 = vadd.f32 0.0, %v794
  %796 = vdwg.mxu0
  %797 = vmatprep.subr.mxu0 %v32
  %798 = vmatpush1.msra.mxu0 %v31
  %799 = vmatprep.subr.mxu0 %v48
  %800 = vmatpush1.msra.mxu0 %v47
  %801 = vmatprep.subr.mxu0 %v64
  %802 = vmatpush1.msra.mxu0 %v63
  %803 = vmatprep.subr.mxu0 %v80
  %804 = vmatpush1.msra.mxu0 %v79
  %805 = vmatprep.subr.mxu0 %v96
  %806 = vmatpush1.msra.mxu0 %v95
  %807 = vmatprep.subr.mxu0 %v112
  %808 = vmatpush1.msra.mxu0 %v111
  %809 = vmatprep.subr.mxu0 %v128
  %810 = vmatpush1.msra.mxu0 %v127
  %811 = vmatprep.subr.mxu0 %v144
  %812 = vmatpush1.msra.mxu0 %v143
  %813 = vmatprep.subr.mxu0 %v160
  %814 = vmatpush1.msra.mxu0 %v159
  %815 = vmatprep.subr.mxu0 %v176
  %816 = vmatpush1.msra.mxu0 %v175
  %817 = vmatprep.subr.mxu0 %v192
  %818 = vmatpush1.msra.mxu0 %v191
  %819 = vmatprep.subr.mxu0 %v208
  %820 = vmatpush1.msra.mxu0 %v207
  %821 = vmatprep.subr.mxu0 %v224
  %822 = vmatpush1.msra.mxu0 %v223
  %823 = vmatprep.subr.mxu0 %v240
  %824 = vmatpush1.msra.mxu0 %v239
  %825 = vmatprep.subr.mxu0 %v256
  %826 = vmatpush1.msra.mxu0 %v255
  %827 = vmatprep.subr.mxu0 %v272
  %828 = vmatpush1.msra.mxu0 %v271
  %829 = vmatprep.subr.mxu0 %v288
  %830 = vmatpush1.msra.mxu0 %v287
  %831 = vmatprep.subr.mxu0 %v304
  %832 = vmatpush1.msra.mxu0 %v303
  %833 = vmatprep.subr.mxu0 %v320
  %834 = vmatpush1.msra.mxu0 %v319
  %835 = vmatprep.subr.mxu0 %v336
  %836 = vmatpush1.msra.mxu0 %v335
  %837 = vmatprep.subr.mxu0 %v352
  %838 = vmatpush1.msra.mxu0 %v351
  %839 = vmatprep.subr.mxu0 %v368
  %840 = vmatpush1.msra.mxu0 %v367
  %841 = vmatprep.subr.mxu0 %v384
  %842 = vmatpush1.msra.mxu0 %v383
  %843 = vmatprep.subr.mxu0 %v400
  %844 = vmatpush1.msra.mxu0 %v399
  %845 = vmatprep.subr.mxu0 0.0
  %846 = vmatpush1.msra.mxu0 0.0
  %847 = vmatprep.subr.mxu0 0.0
  %848 = vmatpush1.msra.mxu0 0.0
  %849 = vmatprep.subr.mxu0 0.0
  %850 = vmatpush1.msra.mxu0 0.0
  %851 = vmatprep.subr.mxu0 0.0
  %852 = vmatpush1.msra.mxu0 0.0
  %853 = vmatprep.subr.mxu0 0.0
  %854 = vmatpush1.msra.mxu0 0.0
  %855 = vmatprep.subr.mxu0 0.0
  %856 = vmatpush1.msra.mxu0 0.0
  %857 = vmatprep.subr.mxu0 0.0
  %858 = vmatpush1.msra.mxu0 0.0
  %859 = vmatprep.subr.mxu0 0.0
  %860 = vmatpush1.msra.mxu0 0.0
  %861 = vmatprep.mubr.f32.mxu0 %v407
  %862 = vmatmul.mubr.f32.gmra.mrb[0].mxu0 %v17
  %v863 = vpop.f32.mrb[0].mxu0
  %v864 = vadd.f32 0.0, %v863
  %v865 = vpop.f32.mrb[0].mxu0
  %v866 = vadd.f32 0.0, %v865
  %867 = vmatprep.mubr.f32.mxu0 %v410
  %868 = vmatmul.mubr.f32.gmra.mrb[0].mxu0 %v19
  %v869 = vpop.f32.mrb[0].mxu0
  %v870 = vadd.f32 0.0, %v869
  %v871 = vpop.f32.mrb[0].mxu0
  %v872 = vadd.f32 0.0, %v871
  %873 = vdwg.mxu0
  %874 = vmatprep.subr.mxu0 %v34
  %875 = vmatpush1.msra.mxu0 %v33
  %876 = vmatprep.subr.mxu0 %v50
  %877 = vmatpush1.msra.mxu0 %v49
  %878 = vmatprep.subr.mxu0 %v66
  %879 = vmatpush1.msra.mxu0 %v65
  %880 = vmatprep.subr.mxu0 %v82
  %881 = vmatpush1.msra.mxu0 %v81
  %882 = vmatprep.subr.mxu0 %v98
  %883 = vmatpush1.msra.mxu0 %v97
  %884 = vmatprep.subr.mxu0 %v114
  %885 = vmatpush1.msra.mxu0 %v113
  %886 = vmatprep.subr.mxu0 %v130
  %887 = vmatpush1.msra.mxu0 %v129
  %888 = vmatprep.subr.mxu0 %v146
  %889 = vmatpush1.msra.mxu0 %v145
  %890 = vmatprep.subr.mxu0 %v162
  %891 = vmatpush1.msra.mxu0 %v161
  %892 = vmatprep.subr.mxu0 %v178
  %893 = vmatpush1.msra.mxu0 %v177
  %894 = vmatprep.subr.mxu0 %v194
  %895 = vmatpush1.msra.mxu0 %v193
  %896 = vmatprep.subr.mxu0 %v210
  %897 = vmatpush1.msra.mxu0 %v209
  %898 = vmatprep.subr.mxu0 %v226
  %899 = vmatpush1.msra.mxu0 %v225
  %900 = vmatprep.subr.mxu0 %v242
  %901 = vmatpush1.msra.mxu0 %v241
  %902 = vmatprep.subr.mxu0 %v258
  %903 = vmatpush1.msra.mxu0 %v257
  %904 = vmatprep.subr.mxu0 %v274
  %905 = vmatpush1.msra.mxu0 %v273
  %906 = vmatprep.subr.mxu0 %v290
  %907 = vmatpush1.msra.mxu0 %v289
  %908 = vmatprep.subr.mxu0 %v306
  %909 = vmatpush1.msra.mxu0 %v305
  %910 = vmatprep.subr.mxu0 %v322
  %911 = vmatpush1.msra.mxu0 %v321
  %912 = vmatprep.subr.mxu0 %v338
  %913 = vmatpush1.msra.mxu0 %v337
  %914 = vmatprep.subr.mxu0 %v354
  %915 = vmatpush1.msra.mxu0 %v353
  %916 = vmatprep.subr.mxu0 %v370
  %917 = vmatpush1.msra.mxu0 %v369
  %918 = vmatprep.subr.mxu0 %v386
  %919 = vmatpush1.msra.mxu0 %v385
  %920 = vmatprep.subr.mxu0 %v402
  %921 = vmatpush1.msra.mxu0 %v401
  %922 = vmatprep.subr.mxu0 0.0
  %923 = vmatpush1.msra.mxu0 0.0
  %924 = vmatprep.subr.mxu0 0.0
  %925 = vmatpush1.msra.mxu0 0.0
  %926 = vmatprep.subr.mxu0 0.0
  %927 = vmatpush1.msra.mxu0 0.0
  %928 = vmatprep.subr.mxu0 0.0
  %929 = vmatpush1.msra.mxu0 0.0
  %930 = vmatprep.subr.mxu0 0.0
  %931 = vmatpush1.msra.mxu0 0.0
  %932 = vmatprep.subr.mxu0 0.0
  %933 = vmatpush1.msra.mxu0 0.0
  %934 = vmatprep.subr.mxu0 0.0
  %935 = vmatpush1.msra.mxu0 0.0
  %936 = vmatprep.subr.mxu0 0.0
  %937 = vmatpush1.msra.mxu0 0.0
  %938 = vmatprep.mubr.f32.mxu0 %v407
  %939 = vmatmul.mubr.f32.gmra.mrb[0].mxu0 %v17
  %v940 = vpop.f32.mrb[0].mxu0
  %v941 = vadd.f32 0.0, %v940
  %v942 = vpop.f32.mrb[0].mxu0
  %v943 = vadd.f32 0.0, %v942
  %944 = vmatprep.mubr.f32.mxu0 %v410
  %945 = vmatmul.mubr.f32.gmra.mrb[0].mxu0 %v19
  %v946 = vpop.f32.mrb[0].mxu0
  %v947 = vadd.f32 0.0, %v946
  %v948 = vpop.f32.mrb[0].mxu0
  %v949 = vadd.f32 0.0, %v948
  %950 = vdwg.mxu0
  %951 = vmatprep.subr.mxu0 %v36
  %952 = vmatpush1.msra.mxu0 %v35
  %953 = vmatprep.subr.mxu0 %v52
  %954 = vmatpush1.msra.mxu0 %v51
  %955 = vmatprep.subr.mxu0 %v68
  %956 = vmatpush1.msra.mxu0 %v67
  %957 = vmatprep.subr.mxu0 %v84
  %958 = vmatpush1.msra.mxu0 %v83
  %959 = vmatprep.subr.mxu0 %v100
  %960 = vmatpush1.msra.mxu0 %v99
  %961 = vmatprep.subr.mxu0 %v116
  %962 = vmatpush1.msra.mxu0 %v115
  %963 = vmatprep.subr.mxu0 %v132
  %964 = vmatpush1.msra.mxu0 %v131
  %965 = vmatprep.subr.mxu0 %v148
  %966 = vmatpush1.msra.mxu0 %v147
  %967 = vmatprep.subr.mxu0 %v164
  %968 = vmatpush1.msra.mxu0 %v163
  %969 = vmatprep.subr.mxu0 %v180
  %970 = vmatpush1.msra.mxu0 %v179
  %971 = vmatprep.subr.mxu0 %v196
  %972 = vmatpush1.msra.mxu0 %v195
  %973 = vmatprep.subr.mxu0 %v212
  %974 = vmatpush1.msra.mxu0 %v211
  %975 = vmatprep.subr.mxu0 %v228
  %976 = vmatpush1.msra.mxu0 %v227
  %977 = vmatprep.subr.mxu0 %v244
  %978 = vmatpush1.msra.mxu0 %v243
  %979 = vmatprep.subr.mxu0 %v260
  %980 = vmatpush1.msra.mxu0 %v259
  %981 = vmatprep.subr.mxu0 %v276
  %982 = vmatpush1.msra.mxu0 %v275
  %983 = vmatprep.subr.mxu0 %v292
  %984 = vmatpush1.msra.mxu0 %v291
  %985 = vmatprep.subr.mxu0 %v308
  %986 = vmatpush1.msra.mxu0 %v307
  %987 = vmatprep.subr.mxu0 %v324
  %988 = vmatpush1.msra.mxu0 %v323
  %989 = vmatprep.subr.mxu0 %v340
  %990 = vmatpush1.msra.mxu0 %v339
  %991 = vmatprep.subr.mxu0 %v356
  %992 = vmatpush1.msra.mxu0 %v355
  %993 = vmatprep.subr.mxu0 %v372
  %994 = vmatpush1.msra.mxu0 %v371
  %995 = vmatprep.subr.mxu0 %v388
  %996 = vmatpush1.msra.mxu0 %v387
  %997 = vmatprep.subr.mxu0 %v404
  %998 = vmatpush1.msra.mxu0 %v403
  %999 = vmatprep.subr.mxu0 0.0
  %1000 = vmatpush1.msra.mxu0 0.0
  %1001 = vmatprep.subr.mxu0 0.0
  %1002 = vmatpush1.msra.mxu0 0.0
  %1003 = vmatprep.subr.mxu0 0.0
  %1004 = vmatpush1.msra.mxu0 0.0
  %1005 = vmatprep.subr.mxu0 0.0
  %1006 = vmatpush1.msra.mxu0 0.0
  %1007 = vmatprep.subr.mxu0 0.0
  %1008 = vmatpush1.msra.mxu0 0.0
  %1009 = vmatprep.subr.mxu0 0.0
  %1010 = vmatpush1.msra.mxu0 0.0
  %1011 = vmatprep.subr.mxu0 0.0
  %1012 = vmatpush1.msra.mxu0 0.0
  %1013 = vmatprep.subr.mxu0 0.0
  %1014 = vmatpush1.msra.mxu0 0.0
  %1015 = vmatprep.mubr.f32.mxu0 %v407
  %1016 = vmatmul.mubr.f32.gmra.mrb[0].mxu0 %v17
  %v1017 = vpop.f32.mrb[0].mxu0
  %v1018 = vadd.f32 0.0, %v1017
  %v1019 = vpop.f32.mrb[0].mxu0
  %v1020 = vadd.f32 0.0, %v1019
  %1021 = vmatprep.mubr.f32.mxu0 %v410
  %1022 = vmatmul.mubr.f32.gmra.mrb[0].mxu0 %v19
  %v1023 = vpop.f32.mrb[0].mxu0
  %v1024 = vadd.f32 0.0, %v1023
  %v1025 = vpop.f32.mrb[0].mxu0
  %v1026 = vadd.f32 0.0, %v1025
  %1027 = vdwg.mxu0
  %v1028 = vadd.f32 %v479, %v481
  %v1029 = vadd.f32 %v1028, %v556
  %v1030 = vadd.f32 %v1029, %v558
  %v1031 = vadd.f32 %v1030, %v633
  %v1032 = vadd.f32 %v1031, %v635
  %v1033 = vadd.f32 %v1032, %v710
  %v1034 = vadd.f32 %v1033, %v712
  %v1035 = vadd.f32 %v1034, %v787
  %v1036 = vadd.f32 %v1035, %v789
  %v1037 = vadd.f32 %v1036, %v864
  %v1038 = vadd.f32 %v1037, %v866
  %v1039 = vadd.f32 %v1038, %v941
  %v1040 = vadd.f32 %v1039, %v943
  %v1041 = vadd.f32 %v1040, %v1018
  %v1042 = vadd.f32 %v1041, %v1020
  %1043 = vadd.xlane.f32.xlu0 %v1042
  %v1044 = vpop.xlane.xlu0 %1043
  %v1045 = vadd.f32 %v485, %v487
  %v1046 = vadd.f32 %v1045, %v562
  %v1047 = vadd.f32 %v1046, %v564
  %v1048 = vadd.f32 %v1047, %v639
  %v1049 = vadd.f32 %v1048, %v641
  %v1050 = vadd.f32 %v1049, %v716
  %v1051 = vadd.f32 %v1050, %v718
  %v1052 = vadd.f32 %v1051, %v793
  %v1053 = vadd.f32 %v1052, %v795
  %v1054 = vadd.f32 %v1053, %v870
  %v1055 = vadd.f32 %v1054, %v872
  %v1056 = vadd.f32 %v1055, %v947
  %v1057 = vadd.f32 %v1056, %v949
  %v1058 = vadd.f32 %v1057, %v1024
  %v1059 = vadd.f32 %v1058, %v1026
  %1060 = vadd.xlane.f32.xlu0 %v1059
  %v1061 = vpop.xlane.xlu0 %1060
  %v1062 = vmul.f32 %v1044, 0.00048828125
  %v1063 = vmul.f32 %v1061, 0.00048828125
  %v1064 = vsub.f32 %v479, %v1062
  %v1065 = vsub.f32 %v481, %v1062
  %v1066 = vsub.f32 %v556, %v1062
  %v1067 = vsub.f32 %v558, %v1062
  %v1068 = vsub.f32 %v633, %v1062
  %v1069 = vsub.f32 %v635, %v1062
  %v1070 = vsub.f32 %v710, %v1062
  %v1071 = vsub.f32 %v712, %v1062
  %v1072 = vsub.f32 %v787, %v1062
  %v1073 = vsub.f32 %v789, %v1062
  %v1074 = vsub.f32 %v864, %v1062
  %v1075 = vsub.f32 %v866, %v1062
  %v1076 = vsub.f32 %v941, %v1062
  %v1077 = vsub.f32 %v943, %v1062
  %v1078 = vsub.f32 %v1018, %v1062
  %v1079 = vsub.f32 %v1020, %v1062
  %v1080 = vsub.f32 %v485, %v1063
  %v1081 = vsub.f32 %v487, %v1063
  %v1082 = vsub.f32 %v562, %v1063
  %v1083 = vsub.f32 %v564, %v1063
  %v1084 = vsub.f32 %v639, %v1063
  %v1085 = vsub.f32 %v641, %v1063
  %v1086 = vsub.f32 %v716, %v1063
  %v1087 = vsub.f32 %v718, %v1063
  %v1088 = vsub.f32 %v793, %v1063
  %v1089 = vsub.f32 %v795, %v1063
  %v1090 = vsub.f32 %v870, %v1063
  %v1091 = vsub.f32 %v872, %v1063
  %v1092 = vsub.f32 %v947, %v1063
  %v1093 = vsub.f32 %v949, %v1063
  %v1094 = vsub.f32 %v1024, %v1063
  %v1095 = vsub.f32 %v1026, %v1063
  %v1096 = vmul.f32 %v1064, %v1064
  %v1097 = vmul.f32 %v1065, %v1065
  %v1098 = vmul.f32 %v1066, %v1066
  %v1099 = vmul.f32 %v1067, %v1067
  %v1100 = vmul.f32 %v1068, %v1068
  %v1101 = vmul.f32 %v1069, %v1069
  %v1102 = vmul.f32 %v1070, %v1070
  %v1103 = vmul.f32 %v1071, %v1071
  %v1104 = vmul.f32 %v1072, %v1072
  %v1105 = vmul.f32 %v1073, %v1073
  %v1106 = vmul.f32 %v1074, %v1074
  %v1107 = vmul.f32 %v1075, %v1075
  %v1108 = vmul.f32 %v1076, %v1076
  %v1109 = vmul.f32 %v1077, %v1077
  %v1110 = vmul.f32 %v1078, %v1078
  %v1111 = vmul.f32 %v1079, %v1079
  %v1112 = vmul.f32 %v1080, %v1080
  %v1113 = vmul.f32 %v1081, %v1081
  %v1114 = vmul.f32 %v1082, %v1082
  %v1115 = vmul.f32 %v1083, %v1083
  %v1116 = vmul.f32 %v1084, %v1084
  %v1117 = vmul.f32 %v1085, %v1085
  %v1118 = vmul.f32 %v1086, %v1086
  %v1119 = vmul.f32 %v1087, %v1087
  %v1120 = vmul.f32 %v1088, %v1088
  %v1121 = vmul.f32 %v1089, %v1089
  %v1122 = vmul.f32 %v1090, %v1090
  %v1123 = vmul.f32 %v1091, %v1091
  %v1124 = vmul.f32 %v1092, %v1092
  %v1125 = vmul.f32 %v1093, %v1093
  %v1126 = vmul.f32 %v1094, %v1094
  %v1127 = vmul.f32 %v1095, %v1095
  %v1128 = vadd.f32 %v1096, %v1097
  %v1129 = vadd.f32 %v1128, %v1098
  %v1130 = vadd.f32 %v1129, %v1099
  %v1131 = vadd.f32 %v1130, %v1100
  %v1132 = vadd.f32 %v1131, %v1101
  %v1133 = vadd.f32 %v1132, %v1102
  %v1134 = vadd.f32 %v1133, %v1103
  %v1135 = vadd.f32 %v1134, %v1104
  %v1136 = vadd.f32 %v1135, %v1105
  %v1137 = vadd.f32 %v1136, %v1106
  %v1138 = vadd.f32 %v1137, %v1107
  %v1139 = vadd.f32 %v1138, %v1108
  %v1140 = vadd.f32 %v1139, %v1109
  %v1141 = vadd.f32 %v1140, %v1110
  %v1142 = vadd.f32 %v1141, %v1111
  %1143 = vadd.xlane.f32.xlu0 %v1142
  %v1144 = vpop.xlane.xlu0 %1143
  %v1145 = vadd.f32 %v1112, %v1113
  %v1146 = vadd.f32 %v1145, %v1114
  %v1147 = vadd.f32 %v1146, %v1115
  %v1148 = vadd.f32 %v1147, %v1116
  %v1149 = vadd.f32 %v1148, %v1117
  %v1150 = vadd.f32 %v1149, %v1118
  %v1151 = vadd.f32 %v1150, %v1119
  %v1152 = vadd.f32 %v1151, %v1120
  %v1153 = vadd.f32 %v1152, %v1121
  %v1154 = vadd.f32 %v1153, %v1122
  %v1155 = vadd.f32 %v1154, %v1123
  %v1156 = vadd.f32 %v1155, %v1124
  %v1157 = vadd.f32 %v1156, %v1125
  %v1158 = vadd.f32 %v1157, %v1126
  %v1159 = vadd.f32 %v1158, %v1127
  %1160 = vadd.xlane.f32.xlu0 %v1159
  %v1161 = vpop.xlane.xlu0 %1160
  %v1162 = vmul.f32 %v1144, 0.00048828125
  %v1163 = vmul.f32 %v1161, 0.00048828125
  %v1164 = vld [vmem:[%s2] sm:$0xff]
  %v1165 = vld [vmem:[%s2 + $0x8] sm:$0xff]
  %v1166 = vadd.f32 %v1162, 1e-05
  %v1167 = vadd.f32 %v1163, 1e-05
  %v1168 = vrsqrt.pop %v1166
  %v1169 = vrsqrt.pop %v1167
  %v1170 = vmul.f32 %v1164, %v1168
  %v1171 = vmul.f32 %v1165, %v1169
  %1173 = vset.pattern.permute.xlu0 0
  %1174 = vperm.xlu0 %1173, %v1170
  %v1175 = vpop.permute.xlu0 %1174
  %1178 = vset.pattern.permute.xlu0 0
  %1179 = vperm.xlu0 %1178, %v1171
  %v1180 = vpop.permute.xlu0 %1179
  %v1182 = vmul.f32 %v1064, %v1175
  %v1183 = vmul.f32 %v1065, %v1175
  %v1184 = vmul.f32 %v1066, %v1175
  %v1185 = vmul.f32 %v1067, %v1175
  %v1186 = vmul.f32 %v1068, %v1175
  %v1187 = vmul.f32 %v1069, %v1175
  %v1188 = vmul.f32 %v1070, %v1175
  %v1189 = vmul.f32 %v1071, %v1175
  %v1190 = vmul.f32 %v1072, %v1175
  %v1191 = vmul.f32 %v1073, %v1175
  %v1192 = vmul.f32 %v1074, %v1175
  %v1193 = vmul.f32 %v1075, %v1175
  %v1194 = vmul.f32 %v1076, %v1175
  %v1195 = vmul.f32 %v1077, %v1175
  %v1196 = vmul.f32 %v1078, %v1175
  %v1197 = vmul.f32 %v1079, %v1175
  %v1198 = vmul.f32 %v1080, %v1180
  %v1199 = vmul.f32 %v1081, %v1180
  %v1200 = vmul.f32 %v1082, %v1180
  %v1201 = vmul.f32 %v1083, %v1180
  %v1202 = vmul.f32 %v1084, %v1180
  %v1203 = vmul.f32 %v1085, %v1180
  %v1204 = vmul.f32 %v1086, %v1180
  %v1205 = vmul.f32 %v1087, %v1180
  %v1206 = vmul.f32 %v1088, %v1180
  %v1207 = vmul.f32 %v1089, %v1180
  %v1208 = vmul.f32 %v1090, %v1180
  %v1209 = vmul.f32 %v1091, %v1180
  %v1210 = vmul.f32 %v1092, %v1180
  %v1211 = vmul.f32 %v1093, %v1180
  %v1212 = vmul.f32 %v1094, %v1180
  %v1213 = vmul.f32 %v1095, %v1180
  %v1214 = vld [vmem:[%s3] sm:$0xff]
  %v1215 = vld [vmem:[%s3 + $0x8] sm:$0xff]
  %1217 = vset.pattern.permute.xlu0 0
  %1218 = vperm.xlu0 %1217, %v1214
  %v1219 = vpop.permute.xlu0 %1218
  %1222 = vset.pattern.permute.xlu0 0
  %1223 = vperm.xlu0 %1222, %v1215
  %v1224 = vpop.permute.xlu0 %1223
  %v1226 = vadd.f32 %v1182, %v1219
  %v1227 = vadd.f32 %v1183, %v1219
  %v1228 = vadd.f32 %v1184, %v1219
  %v1229 = vadd.f32 %v1185, %v1219
  %v1230 = vadd.f32 %v1186, %v1219
  %v1231 = vadd.f32 %v1187, %v1219
  %v1232 = vadd.f32 %v1188, %v1219
  %v1233 = vadd.f32 %v1189, %v1219
  %v1234 = vadd.f32 %v1190, %v1219
  %v1235 = vadd.f32 %v1191, %v1219
  %v1236 = vadd.f32 %v1192, %v1219
  %v1237 = vadd.f32 %v1193, %v1219
  %v1238 = vadd.f32 %v1194, %v1219
  %v1239 = vadd.f32 %v1195, %v1219
  %v1240 = vadd.f32 %v1196, %v1219
  %v1241 = vadd.f32 %v1197, %v1219
  %v1242 = vadd.f32 %v1198, %v1224
  %v1243 = vadd.f32 %v1199, %v1224
  %v1244 = vadd.f32 %v1200, %v1224
  %v1245 = vadd.f32 %v1201, %v1224
  %v1246 = vadd.f32 %v1202, %v1224
  %v1247 = vadd.f32 %v1203, %v1224
  %v1248 = vadd.f32 %v1204, %v1224
  %v1249 = vadd.f32 %v1205, %v1224
  %v1250 = vadd.f32 %v1206, %v1224
  %v1251 = vadd.f32 %v1207, %v1224
  %v1252 = vadd.f32 %v1208, %v1224
  %v1253 = vadd.f32 %v1209, %v1224
  %v1254 = vadd.f32 %v1210, %v1224
  %v1255 = vadd.f32 %v1211, %v1224
  %v1256 = vadd.f32 %v1212, %v1224
  %v1257 = vadd.f32 %v1213, %v1224
  %v1258 = vxor.u32 %v1242, 2147483648
  %v1259 = vxor.u32 %v1243, 2147483648
  %v1260 = vxor.u32 %v1244, 2147483648
  %v1261 = vxor.u32 %v1245, 2147483648
  %v1262 = vxor.u32 %v1246, 2147483648
  %v1263 = vxor.u32 %v1247, 2147483648
  %v1264 = vxor.u32 %v1248, 2147483648
  %v1265 = vxor.u32 %v1249, 2147483648
  %v1266 = vxor.u32 %v1250, 2147483648
  %v1267 = vxor.u32 %v1251, 2147483648
  %v1268 = vxor.u32 %v1252, 2147483648
  %v1269 = vxor.u32 %v1253, 2147483648
  %v1270 = vxor.u32 %v1254, 2147483648
  %v1271 = vxor.u32 %v1255, 2147483648
  %v1272 = vxor.u32 %v1256, 2147483648
  %v1273 = vxor.u32 %v1257, 2147483648
  %v1274 = vmul.f32 %v1258, 1.442695
  %v1275 = vpow.pop %v1274
  %v1276 = vmul.f32 %v1259, 1.442695
  %v1277 = vpow.pop %v1276
  %v1278 = vmul.f32 %v1260, 1.442695
  %v1279 = vpow.pop %v1278
  %v1280 = vmul.f32 %v1261, 1.442695
  %v1281 = vpow.pop %v1280
  %v1282 = vmul.f32 %v1262, 1.442695
  %v1283 = vpow.pop %v1282
  %v1284 = vmul.f32 %v1263, 1.442695
  %v1285 = vpow.pop %v1284
  %v1286 = vmul.f32 %v1264, 1.442695
  %v1287 = vpow.pop %v1286
  %v1288 = vmul.f32 %v1265, 1.442695
  %v1289 = vpow.pop %v1288
  %v1290 = vmul.f32 %v1266, 1.442695
  %v1291 = vpow.pop %v1290
  %v1292 = vmul.f32 %v1267, 1.442695
  %v1293 = vpow.pop %v1292
  %v1294 = vmul.f32 %v1268, 1.442695
  %v1295 = vpow.pop %v1294
  %v1296 = vmul.f32 %v1269, 1.442695
  %v1297 = vpow.pop %v1296
  %v1298 = vmul.f32 %v1270, 1.442695
  %v1299 = vpow.pop %v1298
  %v1300 = vmul.f32 %v1271, 1.442695
  %v1301 = vpow.pop %v1300
  %v1302 = vmul.f32 %v1272, 1.442695
  %v1303 = vpow.pop %v1302
  %v1304 = vmul.f32 %v1273, 1.442695
  %v1305 = vpow.pop %v1304
  %v1306 = vadd.f32 %v1275, 1.0
  %v1307 = vadd.f32 %v1277, 1.0
  %v1308 = vadd.f32 %v1279, 1.0
  %v1309 = vadd.f32 %v1281, 1.0
  %v1310 = vadd.f32 %v1283, 1.0
  %v1311 = vadd.f32 %v1285, 1.0
  %v1312 = vadd.f32 %v1287, 1.0
  %v1313 = vadd.f32 %v1289, 1.0
  %v1314 = vadd.f32 %v1291, 1.0
  %v1315 = vadd.f32 %v1293, 1.0
  %v1316 = vadd.f32 %v1295, 1.0
  %v1317 = vadd.f32 %v1297, 1.0
  %v1318 = vadd.f32 %v1299, 1.0
  %v1319 = vadd.f32 %v1301, 1.0
  %v1320 = vadd.f32 %v1303, 1.0
  %v1321 = vadd.f32 %v1305, 1.0
  %v1322 = vrcp.pop %v1306
  %v1323 = vmul.f32 1.0, %v1322
  %v1324 = vrcp.pop %v1307
  %v1325 = vmul.f32 1.0, %v1324
  %v1326 = vrcp.pop %v1308
  %v1327 = vmul.f32 1.0, %v1326
  %v1328 = vrcp.pop %v1309
  %v1329 = vmul.f32 1.0, %v1328
  %v1330 = vrcp.pop %v1310
  %v1331 = vmul.f32 1.0, %v1330
  %v1332 = vrcp.pop %v1311
  %v1333 = vmul.f32 1.0, %v1332
  %v1334 = vrcp.pop %v1312
  %v1335 = vmul.f32 1.0, %v1334
  %v1336 = vrcp.pop %v1313
  %v1337 = vmul.f32 1.0, %v1336
  %v1338 = vrcp.pop %v1314
  %v1339 = vmul.f32 1.0, %v1338
  %v1340 = vrcp.pop %v1315
  %v1341 = vmul.f32 1.0, %v1340
  %v1342 = vrcp.pop %v1316
  %v1343 = vmul.f32 1.0, %v1342
  %v1344 = vrcp.pop %v1317
  %v1345 = vmul.f32 1.0, %v1344
  %v1346 = vrcp.pop %v1318
  %v1347 = vmul.f32 1.0, %v1346
  %v1348 = vrcp.pop %v1319
  %v1349 = vmul.f32 1.0, %v1348
  %v1350 = vrcp.pop %v1320
  %v1351 = vmul.f32 1.0, %v1350
  %v1352 = vrcp.pop %v1321
  %v1353 = vmul.f32 1.0, %v1352
  %v1354 = vmul.f32 %v1226, %v1323
  %v1355 = vmul.f32 %v1227, %v1325
  %v1356 = vmul.f32 %v1228, %v1327
  %v1357 = vmul.f32 %v1229, %v1329
  %v1358 = vmul.f32 %v1230, %v1331
  %v1359 = vmul.f32 %v1231, %v1333
  %v1360 = vmul.f32 %v1232, %v1335
  %v1361 = vmul.f32 %v1233, %v1337
  %v1362 = vmul.f32 %v1234, %v1339
  %v1363 = vmul.f32 %v1235, %v1341
  %v1364 = vmul.f32 %v1236, %v1343
  %v1365 = vmul.f32 %v1237, %v1345
  %v1366 = vmul.f32 %v1238, %v1347
  %v1367 = vmul.f32 %v1239, %v1349
  %v1368 = vmul.f32 %v1240, %v1351
  %v1369 = vmul.f32 %v1241, %v1353
  %1370 = vst [vmem:[%s4] sm:$0xff] %v1354
  %1371 = vst [vmem:[%s4 + $0x8] sm:$0xff] %v1355
  %1372 = vst [vmem:[%s4 + $0x10] sm:$0xff] %v1356
  %1373 = vst [vmem:[%s4 + $0x18] sm:$0xff] %v1357
  %1374 = vst [vmem:[%s4 + $0x20] sm:$0xff] %v1358
  %1375 = vst [vmem:[%s4 + $0x28] sm:$0xff] %v1359
  %1376 = vst [vmem:[%s4 + $0x30] sm:$0xff] %v1360
  %1377 = vst [vmem:[%s4 + $0x38] sm:$0xff] %v1361
  %1378 = vst [vmem:[%s4 + $0x40] sm:$0xff] %v1362
  %1379 = vst [vmem:[%s4 + $0x48] sm:$0xff] %v1363
  %1380 = vst [vmem:[%s4 + $0x50] sm:$0xff] %v1364
  %1381 = vst [vmem:[%s4 + $0x58] sm:$0xff] %v1365
  %1382 = vst [vmem:[%s4 + $0x60] sm:$0xff] %v1366
  %1383 = vst [vmem:[%s4 + $0x68] sm:$0xff] %v1367
  %1384 = vst [vmem:[%s4 + $0x70] sm:$0xff] %v1368
  %1385 = vst [vmem:[%s4 + $0x78] sm:$0xff] %v1369
  // Predicated region
  $region18: #{_lambda_.4} parent=0 // pred_check
    _
  $region19: #{_lambda_.4} parent=0 // pred_check_branch
    %1387 = sbr.rel (0) target = $region21
  $region20: #{_lambda_.4} parent=0 // pred_region
    _
  $region21: #{_lambda_.4} parent=0 // pred_fallthru
    _
  // Predicated region
  $region22: #{_lambda_.4} parent=0 // pred_check
    _
  $region23: #{_lambda_.4} parent=0 // pred_check_branch
    %1389 = sbr.rel (0) target = $region25
  $region24: #{_lambda_.4} parent=0 // pred_region
    _
  $region25: #{_lambda_.4} parent=0 // pred_fallthru
    _

// kernel: _lambda_.5
$region0: #{_lambda_.5}
  #allocation0 [shape = 'u32[]', space=smem, size = 0x4, offset = 0x4, fixed_abs, tag = 'smem constant byte address 0x4 - core index']
  #allocation1 [shape = 'u32[144,128]{1,0:T(1,128)}', space=vmem, size = 0x12000, scoped, tag = 'internal scratch']
  %s0 = inlined_call_operand.vmem [shape: f32[2,108], index: 0, kind: input, shape index: {}]
  %s1 = inlined_call_operand.vmem [shape: f32[108,2048], index: 1, kind: input, shape index: {}]
  %s2 = inlined_call_operand.vmem [shape: f32[2,2048], index: 2, kind: output, shape index: {}]
  %s3 = sld [smem:[#allocation0]]
  $region18: #{_lambda_.5} parent=0
    _
  %s5 = ssub.s32 1, %s3
  %s6 = scalar_select 0, %s5, %s3
  // Predicated region
  $region2: #{_lambda_.5} parent=0 // pred_check
    _
  $region3: #{_lambda_.5} parent=0 // pred_check_branch
    %8 = sbr.rel (0) target = $region5
  $region4: #{_lambda_.5} parent=0 // pred_region
    _
  $region5: #{_lambda_.5} parent=0 // pred_fallthru
    _
  // Predicated region
  $region6: #{_lambda_.5} parent=0 // pred_check
    _
  $region7: #{_lambda_.5} parent=0 // pred_check_branch
    %10 = sbr.rel (0) target = $region9
  $region8: #{_lambda_.5} parent=0 // pred_region
    _
  $region9: #{_lambda_.5} parent=0 // pred_fallthru
    _
  %v11 = vld [vmem:[%s0] sm:$0x3]
  %v12 = vld [vmem:[%s1] sm:$0xff]
  %v13 = vld [vmem:[%s1 + $0x8] sm:$0xff]
  %v14 = vld [vmem:[%s1 + $0x10] sm:$0xff]
  %v15 = vld [vmem:[%s1 + $0x18] sm:$0xff]
  %v16 = vld [vmem:[%s1 + $0x20] sm:$0xff]
  %v17 = vld [vmem:[%s1 + $0x28] sm:$0xff]
  %v18 = vld [vmem:[%s1 + $0x30] sm:$0xff]
  %v19 = vld [vmem:[%s1 + $0x38] sm:$0xff]
  %v20 = vld [vmem:[%s1 + $0x40] sm:$0xff]
  %v21 = vld [vmem:[%s1 + $0x48] sm:$0xff]
  %v22 = vld [vmem:[%s1 + $0x50] sm:$0xff]
  %v23 = vld [vmem:[%s1 + $0x58] sm:$0xff]
  %v24 = vld [vmem:[%s1 + $0x60] sm:$0xff]
  %v25 = vld [vmem:[%s1 + $0x68] sm:$0xff]
  %v26 = vld [vmem:[%s1 + $0x70] sm:$0xff]
  %v27 = vld [vmem:[%s1 + $0x78] sm:$0xff]
  %v28 = vld [vmem:[%s1 + $0x80] sm:$0xff]
  %v29 = vld [vmem:[%s1 + $0x88] sm:$0xff]
  %v30 = vld [vmem:[%s1 + $0x90] sm:$0xff]
  %v31 = vld [vmem:[%s1 + $0x98] sm:$0xff]
  %v32 = vld [vmem:[%s1 + $0xa0] sm:$0xff]
  %v33 = vld [vmem:[%s1 + $0xa8] sm:$0xff]
  %v34 = vld [vmem:[%s1 + $0xb0] sm:$0xff]
  %v35 = vld [vmem:[%s1 + $0xb8] sm:$0xff]
  %v36 = vld [vmem:[%s1 + $0xc0] sm:$0xff]
  %v37 = vld [vmem:[%s1 + $0xc8] sm:$0xff]
  %v38 = vld [vmem:[%s1 + $0xd0] sm:$0xff]
  %v39 = vld [vmem:[%s1 + $0xd8] sm:$0xff]
  %v40 = vld [vmem:[%s1 + $0xe0] sm:$0xff]
  %v41 = vld [vmem:[%s1 + $0xe8] sm:$0xff]
  %v42 = vld [vmem:[%s1 + $0xf0] sm:$0xff]
  %v43 = vld [vmem:[%s1 + $0xf8] sm:$0xff]
  %v44 = vld [vmem:[%s1 + $0x100] sm:$0xff]
  %v45 = vld [vmem:[%s1 + $0x108] sm:$0xff]
  %v46 = vld [vmem:[%s1 + $0x110] sm:$0xff]
  %v47 = vld [vmem:[%s1 + $0x118] sm:$0xff]
  %v48 = vld [vmem:[%s1 + $0x120] sm:$0xff]
  %v49 = vld [vmem:[%s1 + $0x128] sm:$0xff]
  %v50 = vld [vmem:[%s1 + $0x130] sm:$0xff]
  %v51 = vld [vmem:[%s1 + $0x138] sm:$0xff]
  %v52 = vld [vmem:[%s1 + $0x140] sm:$0xff]
  %v53 = vld [vmem:[%s1 + $0x148] sm:$0xff]
  %v54 = vld [vmem:[%s1 + $0x150] sm:$0xff]
  %v55 = vld [vmem:[%s1 + $0x158] sm:$0xff]
  %v56 = vld [vmem:[%s1 + $0x160] sm:$0xff]
  %v57 = vld [vmem:[%s1 + $0x168] sm:$0xff]
  %v58 = vld [vmem:[%s1 + $0x170] sm:$0xff]
  %v59 = vld [vmem:[%s1 + $0x178] sm:$0xff]
  %v60 = vld [vmem:[%s1 + $0x180] sm:$0xff]
  %v61 = vld [vmem:[%s1 + $0x188] sm:$0xff]
  %v62 = vld [vmem:[%s1 + $0x190] sm:$0xff]
  %v63 = vld [vmem:[%s1 + $0x198] sm:$0xff]
  %v64 = vld [vmem:[%s1 + $0x1a0] sm:$0xff]
  %v65 = vld [vmem:[%s1 + $0x1a8] sm:$0xff]
  %v66 = vld [vmem:[%s1 + $0x1b0] sm:$0xff]
  %v67 = vld [vmem:[%s1 + $0x1b8] sm:$0xff]
  %v68 = vld [vmem:[%s1 + $0x1c0] sm:$0xff]
  %v69 = vld [vmem:[%s1 + $0x1c8] sm:$0xff]
  %v70 = vld [vmem:[%s1 + $0x1d0] sm:$0xff]
  %v71 = vld [vmem:[%s1 + $0x1d8] sm:$0xff]
  %v72 = vld [vmem:[%s1 + $0x1e0] sm:$0xff]
  %v73 = vld [vmem:[%s1 + $0x1e8] sm:$0xff]
  %v74 = vld [vmem:[%s1 + $0x1f0] sm:$0xff]
  %v75 = vld [vmem:[%s1 + $0x1f8] sm:$0xff]
  %v76 = vld [vmem:[%s1 + $0x200] sm:$0xff]
  %v77 = vld [vmem:[%s1 + $0x208] sm:$0xff]
  %v78 = vld [vmem:[%s1 + $0x210] sm:$0xff]
  %v79 = vld [vmem:[%s1 + $0x218] sm:$0xff]
  %v80 = vld [vmem:[%s1 + $0x220] sm:$0xff]
  %v81 = vld [vmem:[%s1 + $0x228] sm:$0xff]
  %v82 = vld [vmem:[%s1 + $0x230] sm:$0xff]
  %v83 = vld [vmem:[%s1 + $0x238] sm:$0xff]
  %v84 = vld [vmem:[%s1 + $0x240] sm:$0xff]
  %v85 = vld [vmem:[%s1 + $0x248] sm:$0xff]
  %v86 = vld [vmem:[%s1 + $0x250] sm:$0xff]
  %v87 = vld [vmem:[%s1 + $0x258] sm:$0xff]
  %v88 = vld [vmem:[%s1 + $0x260] sm:$0xff]
  %v89 = vld [vmem:[%s1 + $0x268] sm:$0xff]
  %v90 = vld [vmem:[%s1 + $0x270] sm:$0xff]
  %v91 = vld [vmem:[%s1 + $0x278] sm:$0xff]
  %v92 = vld [vmem:[%s1 + $0x280] sm:$0xff]
  %v93 = vld [vmem:[%s1 + $0x288] sm:$0xff]
  %v94 = vld [vmem:[%s1 + $0x290] sm:$0xff]
  %v95 = vld [vmem:[%s1 + $0x298] sm:$0xff]
  %v96 = vld [vmem:[%s1 + $0x2a0] sm:$0xff]
  %v97 = vld [vmem:[%s1 + $0x2a8] sm:$0xff]
  %v98 = vld [vmem:[%s1 + $0x2b0] sm:$0xff]
  %v99 = vld [vmem:[%s1 + $0x2b8] sm:$0xff]
  %v100 = vld [vmem:[%s1 + $0x2c0] sm:$0xff]
  %v101 = vld [vmem:[%s1 + $0x2c8] sm:$0xff]
  %v102 = vld [vmem:[%s1 + $0x2d0] sm:$0xff]
  %v103 = vld [vmem:[%s1 + $0x2d8] sm:$0xff]
  %v104 = vld [vmem:[%s1 + $0x2e0] sm:$0xff]
  %v105 = vld [vmem:[%s1 + $0x2e8] sm:$0xff]
  %v106 = vld [vmem:[%s1 + $0x2f0] sm:$0xff]
  %v107 = vld [vmem:[%s1 + $0x2f8] sm:$0xff]
  %v108 = vld [vmem:[%s1 + $0x300] sm:$0xff]
  %v109 = vld [vmem:[%s1 + $0x308] sm:$0xff]
  %v110 = vld [vmem:[%s1 + $0x310] sm:$0xff]
  %v111 = vld [vmem:[%s1 + $0x318] sm:$0xff]
  %v112 = vld [vmem:[%s1 + $0x320] sm:$0xff]
  %v113 = vld [vmem:[%s1 + $0x328] sm:$0xff]
  %v114 = vld [vmem:[%s1 + $0x330] sm:$0xff]
  %v115 = vld [vmem:[%s1 + $0x338] sm:$0xff]
  %v116 = vld [vmem:[%s1 + $0x340] sm:$0xff]
  %v117 = vld [vmem:[%s1 + $0x348] sm:$0xff]
  %v118 = vld [vmem:[%s1 + $0x350] sm:$0xff]
  %v119 = vld [vmem:[%s1 + $0x358] sm:$0xff]
  %v120 = vld [vmem:[%s1 + $0x360] sm:$0xff]
  %v121 = vld [vmem:[%s1 + $0x368] sm:$0xff]
  %v122 = vld [vmem:[%s1 + $0x370] sm:$0xff]
  %v123 = vld [vmem:[%s1 + $0x378] sm:$0xff]
  %v124 = vld [vmem:[%s1 + $0x380] sm:$0xff]
  %v125 = vld [vmem:[%s1 + $0x388] sm:$0xff]
  %v126 = vld [vmem:[%s1 + $0x390] sm:$0xff]
  %v127 = vld [vmem:[%s1 + $0x398] sm:$0xff]
  %v128 = vld [vmem:[%s1 + $0x3a0] sm:$0xff]
  %v129 = vld [vmem:[%s1 + $0x3a8] sm:$0xff]
  %v130 = vld [vmem:[%s1 + $0x3b0] sm:$0xff]
  %v131 = vld [vmem:[%s1 + $0x3b8] sm:$0xff]
  %v132 = vld [vmem:[%s1 + $0x3c0] sm:$0xff]
  %v133 = vld [vmem:[%s1 + $0x3c8] sm:$0xff]
  %v134 = vld [vmem:[%s1 + $0x3d0] sm:$0xff]
  %v135 = vld [vmem:[%s1 + $0x3d8] sm:$0xff]
  %v136 = vld [vmem:[%s1 + $0x3e0] sm:$0xff]
  %v137 = vld [vmem:[%s1 + $0x3e8] sm:$0xff]
  %v138 = vld [vmem:[%s1 + $0x3f0] sm:$0xff]
  %v139 = vld [vmem:[%s1 + $0x3f8] sm:$0xff]
  %v140 = vld [vmem:[%s1 + $0x400] sm:$0xff]
  %v141 = vld [vmem:[%s1 + $0x408] sm:$0xff]
  %v142 = vld [vmem:[%s1 + $0x410] sm:$0xff]
  %v143 = vld [vmem:[%s1 + $0x418] sm:$0xff]
  %v144 = vld [vmem:[%s1 + $0x420] sm:$0xff]
  %v145 = vld [vmem:[%s1 + $0x428] sm:$0xff]
  %v146 = vld [vmem:[%s1 + $0x430] sm:$0xff]
  %v147 = vld [vmem:[%s1 + $0x438] sm:$0xff]
  %v148 = vld [vmem:[%s1 + $0x440] sm:$0xff]
  %v149 = vld [vmem:[%s1 + $0x448] sm:$0xff]
  %v150 = vld [vmem:[%s1 + $0x450] sm:$0xff]
  %v151 = vld [vmem:[%s1 + $0x458] sm:$0xff]
  %v152 = vld [vmem:[%s1 + $0x460] sm:$0xff]
  %v153 = vld [vmem:[%s1 + $0x468] sm:$0xff]
  %v154 = vld [vmem:[%s1 + $0x470] sm:$0xff]
  %v155 = vld [vmem:[%s1 + $0x478] sm:$0xff]
  %v156 = vld [vmem:[%s1 + $0x480] sm:$0xff]
  %v157 = vld [vmem:[%s1 + $0x488] sm:$0xff]
  %v158 = vld [vmem:[%s1 + $0x490] sm:$0xff]
  %v159 = vld [vmem:[%s1 + $0x498] sm:$0xff]
  %v160 = vld [vmem:[%s1 + $0x4a0] sm:$0xff]
  %v161 = vld [vmem:[%s1 + $0x4a8] sm:$0xff]
  %v162 = vld [vmem:[%s1 + $0x4b0] sm:$0xff]
  %v163 = vld [vmem:[%s1 + $0x4b8] sm:$0xff]
  %v164 = vld [vmem:[%s1 + $0x4c0] sm:$0xff]
  %v165 = vld [vmem:[%s1 + $0x4c8] sm:$0xff]
  %v166 = vld [vmem:[%s1 + $0x4d0] sm:$0xff]
  %v167 = vld [vmem:[%s1 + $0x4d8] sm:$0xff]
  %v168 = vld [vmem:[%s1 + $0x4e0] sm:$0xff]
  %v169 = vld [vmem:[%s1 + $0x4e8] sm:$0xff]
  %v170 = vld [vmem:[%s1 + $0x4f0] sm:$0xff]
  %v171 = vld [vmem:[%s1 + $0x4f8] sm:$0xff]
  %v172 = vld [vmem:[%s1 + $0x500] sm:$0xff]
  %v173 = vld [vmem:[%s1 + $0x508] sm:$0xff]
  %v174 = vld [vmem:[%s1 + $0x510] sm:$0xff]
  %v175 = vld [vmem:[%s1 + $0x518] sm:$0xff]
  %v176 = vld [vmem:[%s1 + $0x520] sm:$0xff]
  %v177 = vld [vmem:[%s1 + $0x528] sm:$0xff]
  %v178 = vld [vmem:[%s1 + $0x530] sm:$0xff]
  %v179 = vld [vmem:[%s1 + $0x538] sm:$0xff]
  %v180 = vld [vmem:[%s1 + $0x540] sm:$0xff]
  %v181 = vld [vmem:[%s1 + $0x548] sm:$0xff]
  %v182 = vld [vmem:[%s1 + $0x550] sm:$0xff]
  %v183 = vld [vmem:[%s1 + $0x558] sm:$0xff]
  %v184 = vld [vmem:[%s1 + $0x560] sm:$0xff]
  %v185 = vld [vmem:[%s1 + $0x568] sm:$0xff]
  %v186 = vld [vmem:[%s1 + $0x570] sm:$0xff]
  %v187 = vld [vmem:[%s1 + $0x578] sm:$0xff]
  %v188 = vld [vmem:[%s1 + $0x580] sm:$0xff]
  %v189 = vld [vmem:[%s1 + $0x588] sm:$0xff]
  %v190 = vld [vmem:[%s1 + $0x590] sm:$0xff]
  %v191 = vld [vmem:[%s1 + $0x598] sm:$0xff]
  %v192 = vld [vmem:[%s1 + $0x5a0] sm:$0xff]
  %v193 = vld [vmem:[%s1 + $0x5a8] sm:$0xff]
  %v194 = vld [vmem:[%s1 + $0x5b0] sm:$0xff]
  %v195 = vld [vmem:[%s1 + $0x5b8] sm:$0xff]
  %v196 = vld [vmem:[%s1 + $0x5c0] sm:$0xff]
  %v197 = vld [vmem:[%s1 + $0x5c8] sm:$0xff]
  %v198 = vld [vmem:[%s1 + $0x5d0] sm:$0xff]
  %v199 = vld [vmem:[%s1 + $0x5d8] sm:$0xff]
  %v200 = vld [vmem:[%s1 + $0x5e0] sm:$0xff]
  %v201 = vld [vmem:[%s1 + $0x5e8] sm:$0xff]
  %v202 = vld [vmem:[%s1 + $0x5f0] sm:$0xff]
  %v203 = vld [vmem:[%s1 + $0x5f8] sm:$0xff]
  %v204 = vld [vmem:[%s1 + $0x600] sm:$0xff]
  %v205 = vld [vmem:[%s1 + $0x608] sm:$0xff]
  %v206 = vld [vmem:[%s1 + $0x610] sm:$0xff]
  %v207 = vld [vmem:[%s1 + $0x618] sm:$0xff]
  %v208 = vld [vmem:[%s1 + $0x620] sm:$0xff]
  %v209 = vld [vmem:[%s1 + $0x628] sm:$0xff]
  %v210 = vld [vmem:[%s1 + $0x630] sm:$0xff]
  %v211 = vld [vmem:[%s1 + $0x638] sm:$0xff]
  %v212 = vld [vmem:[%s1 + $0x640] sm:$0xff]
  %v213 = vld [vmem:[%s1 + $0x648] sm:$0xff]
  %v214 = vld [vmem:[%s1 + $0x650] sm:$0xff]
  %v215 = vld [vmem:[%s1 + $0x658] sm:$0xff]
  %v216 = vld [vmem:[%s1 + $0x660] sm:$0xff]
  %v217 = vld [vmem:[%s1 + $0x668] sm:$0xff]
  %v218 = vld [vmem:[%s1 + $0x670] sm:$0xff]
  %v219 = vld [vmem:[%s1 + $0x678] sm:$0xff]
  %v220 = vld [vmem:[%s1 + $0x680] sm:$0xf]
  %v221 = vld [vmem:[%s1 + $0x688] sm:$0xf]
  %v222 = vld [vmem:[%s1 + $0x690] sm:$0xf]
  %v223 = vld [vmem:[%s1 + $0x698] sm:$0xf]
  %v224 = vld [vmem:[%s1 + $0x6a0] sm:$0xf]
  %v225 = vld [vmem:[%s1 + $0x6a8] sm:$0xf]
  %v226 = vld [vmem:[%s1 + $0x6b0] sm:$0xf]
  %v227 = vld [vmem:[%s1 + $0x6b8] sm:$0xf]
  %v228 = vld [vmem:[%s1 + $0x6c0] sm:$0xf]
  %v229 = vld [vmem:[%s1 + $0x6c8] sm:$0xf]
  %v230 = vld [vmem:[%s1 + $0x6d0] sm:$0xf]
  %v231 = vld [vmem:[%s1 + $0x6d8] sm:$0xf]
  %v232 = vld [vmem:[%s1 + $0x6e0] sm:$0xf]
  %v233 = vld [vmem:[%s1 + $0x6e8] sm:$0xf]
  %v234 = vld [vmem:[%s1 + $0x6f0] sm:$0xf]
  %v235 = vld [vmem:[%s1 + $0x6f8] sm:$0xf]
  %vm236 = vcmask 883712
  %v238 = vsel %vm236, %v11, 0
  %vm240 = vcmask 1043456
  %v242 = vsel %vm240, %v220, 0
  %v245 = vsel %vm240, %v221, 0
  %v248 = vsel %vm240, %v222, 0
  %v251 = vsel %vm240, %v223, 0
  %v254 = vsel %vm240, %v224, 0
  %v257 = vsel %vm240, %v225, 0
  %v260 = vsel %vm240, %v226, 0
  %v263 = vsel %vm240, %v227, 0
  %v266 = vsel %vm240, %v228, 0
  %v269 = vsel %vm240, %v229, 0
  %v272 = vsel %vm240, %v230, 0
  %v275 = vsel %vm240, %v231, 0
  %v278 = vsel %vm240, %v232, 0
  %v281 = vsel %vm240, %v233, 0
  %v284 = vsel %vm240, %v234, 0
  %v287 = vsel %vm240, %v235, 0
  %289 = vmatprep.subr.mxu0 %v13
  %290 = vmatpush1.msra.mxu0 %v12
  %291 = vmatprep.subr.mxu0 %v29
  %292 = vmatpush1.msra.mxu0 %v28
  %293 = vmatprep.subr.mxu0 %v45
  %294 = vmatpush1.msra.mxu0 %v44
  %295 = vmatprep.subr.mxu0 %v61
  %296 = vmatpush1.msra.mxu0 %v60
  %297 = vmatprep.subr.mxu0 %v77
  %298 = vmatpush1.msra.mxu0 %v76
  %299 = vmatprep.subr.mxu0 %v93
  %300 = vmatpush1.msra.mxu0 %v92
  %301 = vmatprep.subr.mxu0 %v109
  %302 = vmatpush1.msra.mxu0 %v108
  %303 = vmatprep.subr.mxu0 %v125
  %304 = vmatpush1.msra.mxu0 %v124
  %305 = vmatprep.subr.mxu0 %v141
  %306 = vmatpush1.msra.mxu0 %v140
  %307 = vmatprep.subr.mxu0 %v157
  %308 = vmatpush1.msra.mxu0 %v156
  %309 = vmatprep.subr.mxu0 %v173
  %310 = vmatpush1.msra.mxu0 %v172
  %311 = vmatprep.subr.mxu0 %v189
  %312 = vmatpush1.msra.mxu0 %v188
  %313 = vmatprep.subr.mxu0 %v205
  %314 = vmatpush1.msra.mxu0 %v204
  %315 = vmatprep.subr.mxu0 %v245
  %316 = vmatpush1.msra.mxu0 %v242
  %317 = vmatprep.subr.mxu0 0.0
  %318 = vmatpush1.msra.mxu0 0.0
  %319 = vmatprep.subr.mxu0 0.0
  %320 = vmatpush1.msra.mxu0 0.0
  %321 = vmatprep.subr.mxu0 0.0
  %322 = vmatpush1.msra.mxu0 0.0
  %323 = vmatprep.subr.mxu0 0.0
  %324 = vmatpush1.msra.mxu0 0.0
  %325 = vmatprep.subr.mxu0 0.0
  %326 = vmatpush1.msra.mxu0 0.0
  %327 = vmatprep.subr.mxu0 0.0
  %328 = vmatpush1.msra.mxu0 0.0
  %329 = vmatprep.subr.mxu0 0.0
  %330 = vmatpush1.msra.mxu0 0.0
  %331 = vmatprep.subr.mxu0 0.0
  %332 = vmatpush1.msra.mxu0 0.0
  %333 = vmatprep.subr.mxu0 0.0
  %334 = vmatpush1.msra.mxu0 0.0
  %335 = vmatprep.subr.mxu0 0.0
  %336 = vmatpush1.msra.mxu0 0.0
  %337 = vmatprep.subr.mxu0 0.0
  %338 = vmatpush1.msra.mxu0 0.0
  %339 = vmatprep.subr.mxu0 0.0
  %340 = vmatpush1.msra.mxu0 0.0
  %341 = vmatprep.subr.mxu0 0.0
  %342 = vmatpush1.msra.mxu0 0.0
  %343 = vmatprep.subr.mxu0 0.0
  %344 = vmatpush1.msra.mxu0 0.0
  %345 = vmatprep.subr.mxu0 0.0
  %346 = vmatpush1.msra.mxu0 0.0
  %347 = vmatprep.subr.mxu0 0.0
  %348 = vmatpush1.msra.mxu0 0.0
  %349 = vmatprep.subr.mxu0 0.0
  %350 = vmatpush1.msra.mxu0 0.0
  %351 = vmatprep.subr.mxu0 0.0
  %352 = vmatpush1.msra.mxu0 0.0
  %353 = vmatprep.mubr.f32.mxu0 0.0
  %354 = vmatmul.mubr.f32.gmra.mrb[0].mxu0 %v238
  %v355 = vpop.f32.mrb[0].mxu0
  %v356 = vadd.f32 0.0, %v355
  %v357 = vpop.f32.mrb[0].mxu0
  %v358 = vadd.f32 0.0, %v357
  %359 = vdwg.mxu0
  %360 = vmatprep.subr.mxu0 %v15
  %361 = vmatpush1.msra.mxu0 %v14
  %362 = vmatprep.subr.mxu0 %v31
  %363 = vmatpush1.msra.mxu0 %v30
  %364 = vmatprep.subr.mxu0 %v47
  %365 = vmatpush1.msra.mxu0 %v46
  %366 = vmatprep.subr.mxu0 %v63
  %367 = vmatpush1.msra.mxu0 %v62
  %368 = vmatprep.subr.mxu0 %v79
  %369 = vmatpush1.msra.mxu0 %v78
  %370 = vmatprep.subr.mxu0 %v95
  %371 = vmatpush1.msra.mxu0 %v94
  %372 = vmatprep.subr.mxu0 %v111
  %373 = vmatpush1.msra.mxu0 %v110
  %374 = vmatprep.subr.mxu0 %v127
  %375 = vmatpush1.msra.mxu0 %v126
  %376 = vmatprep.subr.mxu0 %v143
  %377 = vmatpush1.msra.mxu0 %v142
  %378 = vmatprep.subr.mxu0 %v159
  %379 = vmatpush1.msra.mxu0 %v158
  %380 = vmatprep.subr.mxu0 %v175
  %381 = vmatpush1.msra.mxu0 %v174
  %382 = vmatprep.subr.mxu0 %v191
  %383 = vmatpush1.msra.mxu0 %v190
  %384 = vmatprep.subr.mxu0 %v207
  %385 = vmatpush1.msra.mxu0 %v206
  %386 = vmatprep.subr.mxu0 %v251
  %387 = vmatpush1.msra.mxu0 %v248
  %388 = vmatprep.subr.mxu0 0.0
  %389 = vmatpush1.msra.mxu0 0.0
  %390 = vmatprep.subr.mxu0 0.0
  %391 = vmatpush1.msra.mxu0 0.0
  %392 = vmatprep.subr.mxu0 0.0
  %393 = vmatpush1.msra.mxu0 0.0
  %394 = vmatprep.subr.mxu0 0.0
  %395 = vmatpush1.msra.mxu0 0.0
  %396 = vmatprep.subr.mxu0 0.0
  %397 = vmatpush1.msra.mxu0 0.0
  %398 = vmatprep.subr.mxu0 0.0
  %399 = vmatpush1.msra.mxu0 0.0
  %400 = vmatprep.subr.mxu0 0.0
  %401 = vmatpush1.msra.mxu0 0.0
  %402 = vmatprep.subr.mxu0 0.0
  %403 = vmatpush1.msra.mxu0 0.0
  %404 = vmatprep.subr.mxu0 0.0
  %405 = vmatpush1.msra.mxu0 0.0
  %406 = vmatprep.subr.mxu0 0.0
  %407 = vmatpush1.msra.mxu0 0.0
  %408 = vmatprep.subr.mxu0 0.0
  %409 = vmatpush1.msra.mxu0 0.0
  %410 = vmatprep.subr.mxu0 0.0
  %411 = vmatpush1.msra.mxu0 0.0
  %412 = vmatprep.subr.mxu0 0.0
  %413 = vmatpush1.msra.mxu0 0.0
  %414 = vmatprep.subr.mxu0 0.0
  %415 = vmatpush1.msra.mxu0 0.0
  %416 = vmatprep.subr.mxu0 0.0
  %417 = vmatpush1.msra.mxu0 0.0
  %418 = vmatprep.subr.mxu0 0.0
  %419 = vmatpush1.msra.mxu0 0.0
  %420 = vmatprep.subr.mxu0 0.0
  %421 = vmatpush1.msra.mxu0 0.0
  %422 = vmatprep.subr.mxu0 0.0
  %423 = vmatpush1.msra.mxu0 0.0
  %424 = vmatprep.mubr.f32.mxu0 0.0
  %425 = vmatmul.mubr.f32.gmra.mrb[0].mxu0 %v238
  %v426 = vpop.f32.mrb[0].mxu0
  %v427 = vadd.f32 0.0, %v426
  %v428 = vpop.f32.mrb[0].mxu0
  %v429 = vadd.f32 0.0, %v428
  %430 = vdwg.mxu0
  %431 = vmatprep.subr.mxu0 %v17
  %432 = vmatpush1.msra.mxu0 %v16
  %433 = vmatprep.subr.mxu0 %v33
  %434 = vmatpush1.msra.mxu0 %v32
  %435 = vmatprep.subr.mxu0 %v49
  %436 = vmatpush1.msra.mxu0 %v48
  %437 = vmatprep.subr.mxu0 %v65
  %438 = vmatpush1.msra.mxu0 %v64
  %439 = vmatprep.subr.mxu0 %v81
  %440 = vmatpush1.msra.mxu0 %v80
  %441 = vmatprep.subr.mxu0 %v97
  %442 = vmatpush1.msra.mxu0 %v96
  %443 = vmatprep.subr.mxu0 %v113
  %444 = vmatpush1.msra.mxu0 %v112
  %445 = vmatprep.subr.mxu0 %v129
  %446 = vmatpush1.msra.mxu0 %v128
  %447 = vmatprep.subr.mxu0 %v145
  %448 = vmatpush1.msra.mxu0 %v144
  %449 = vmatprep.subr.mxu0 %v161
  %450 = vmatpush1.msra.mxu0 %v160
  %451 = vmatprep.subr.mxu0 %v177
  %452 = vmatpush1.msra.mxu0 %v176
  %453 = vmatprep.subr.mxu0 %v193
  %454 = vmatpush1.msra.mxu0 %v192
  %455 = vmatprep.subr.mxu0 %v209
  %456 = vmatpush1.msra.mxu0 %v208
  %457 = vmatprep.subr.mxu0 %v257
  %458 = vmatpush1.msra.mxu0 %v254
  %459 = vmatprep.subr.mxu0 0.0
  %460 = vmatpush1.msra.mxu0 0.0
  %461 = vmatprep.subr.mxu0 0.0
  %462 = vmatpush1.msra.mxu0 0.0
  %463 = vmatprep.subr.mxu0 0.0
  %464 = vmatpush1.msra.mxu0 0.0
  %465 = vmatprep.subr.mxu0 0.0
  %466 = vmatpush1.msra.mxu0 0.0
  %467 = vmatprep.subr.mxu0 0.0
  %468 = vmatpush1.msra.mxu0 0.0
  %469 = vmatprep.subr.mxu0 0.0
  %470 = vmatpush1.msra.mxu0 0.0
  %471 = vmatprep.subr.mxu0 0.0
  %472 = vmatpush1.msra.mxu0 0.0
  %473 = vmatprep.subr.mxu0 0.0
  %474 = vmatpush1.msra.mxu0 0.0
  %475 = vmatprep.subr.mxu0 0.0
  %476 = vmatpush1.msra.mxu0 0.0
  %477 = vmatprep.subr.mxu0 0.0
  %478 = vmatpush1.msra.mxu0 0.0
  %479 = vmatprep.subr.mxu0 0.0
  %480 = vmatpush1.msra.mxu0 0.0
  %481 = vmatprep.subr.mxu0 0.0
  %482 = vmatpush1.msra.mxu0 0.0
  %483 = vmatprep.subr.mxu0 0.0
  %484 = vmatpush1.msra.mxu0 0.0
  %485 = vmatprep.subr.mxu0 0.0
  %486 = vmatpush1.msra.mxu0 0.0
  %487 = vmatprep.subr.mxu0 0.0
  %488 = vmatpush1.msra.mxu0 0.0
  %489 = vmatprep.subr.mxu0 0.0
  %490 = vmatpush1.msra.mxu0 0.0
  %491 = vmatprep.subr.mxu0 0.0
  %492 = vmatpush1.msra.mxu0 0.0
  %493 = vmatprep.subr.mxu0 0.0
  %494 = vmatpush1.msra.mxu0 0.0
  %495 = vmatprep.mubr.f32.mxu0 0.0
  %496 = vmatmul.mubr.f32.gmra.mrb[0].mxu0 %v238
  %v497 = vpop.f32.mrb[0].mxu0
  %v498 = vadd.f32 0.0, %v497
  %v499 = vpop.f32.mrb[0].mxu0
  %v500 = vadd.f32 0.0, %v499
  %501 = vdwg.mxu0
  %502 = vmatprep.subr.mxu0 %v19
  %503 = vmatpush1.msra.mxu0 %v18
  %504 = vmatprep.subr.mxu0 %v35
  %505 = vmatpush1.msra.mxu0 %v34
  %506 = vmatprep.subr.mxu0 %v51
  %507 = vmatpush1.msra.mxu0 %v50
  %508 = vmatprep.subr.mxu0 %v67
  %509 = vmatpush1.msra.mxu0 %v66
  %510 = vmatprep.subr.mxu0 %v83
  %511 = vmatpush1.msra.mxu0 %v82
  %512 = vmatprep.subr.mxu0 %v99
  %513 = vmatpush1.msra.mxu0 %v98
  %514 = vmatprep.subr.mxu0 %v115
  %515 = vmatpush1.msra.mxu0 %v114
  %516 = vmatprep.subr.mxu0 %v131
  %517 = vmatpush1.msra.mxu0 %v130
  %518 = vmatprep.subr.mxu0 %v147
  %519 = vmatpush1.msra.mxu0 %v146
  %520 = vmatprep.subr.mxu0 %v163
  %521 = vmatpush1.msra.mxu0 %v162
  %522 = vmatprep.subr.mxu0 %v179
  %523 = vmatpush1.msra.mxu0 %v178
  %524 = vmatprep.subr.mxu0 %v195
  %525 = vmatpush1.msra.mxu0 %v194
  %526 = vmatprep.subr.mxu0 %v211
  %527 = vmatpush1.msra.mxu0 %v210
  %528 = vmatprep.subr.mxu0 %v263
  %529 = vmatpush1.msra.mxu0 %v260
  %530 = vmatprep.subr.mxu0 0.0
  %531 = vmatpush1.msra.mxu0 0.0
  %532 = vmatprep.subr.mxu0 0.0
  %533 = vmatpush1.msra.mxu0 0.0
  %534 = vmatprep.subr.mxu0 0.0
  %535 = vmatpush1.msra.mxu0 0.0
  %536 = vmatprep.subr.mxu0 0.0
  %537 = vmatpush1.msra.mxu0 0.0
  %538 = vmatprep.subr.mxu0 0.0
  %539 = vmatpush1.msra.mxu0 0.0
  %540 = vmatprep.subr.mxu0 0.0
  %541 = vmatpush1.msra.mxu0 0.0
  %542 = vmatprep.subr.mxu0 0.0
  %543 = vmatpush1.msra.mxu0 0.0
  %544 = vmatprep.subr.mxu0 0.0
  %545 = vmatpush1.msra.mxu0 0.0
  %546 = vmatprep.subr.mxu0 0.0
  %547 = vmatpush1.msra.mxu0 0.0
  %548 = vmatprep.subr.mxu0 0.0
  %549 = vmatpush1.msra.mxu0 0.0
  %550 = vmatprep.subr.mxu0 0.0
  %551 = vmatpush1.msra.mxu0 0.0
  %552 = vmatprep.subr.mxu0 0.0
  %553 = vmatpush1.msra.mxu0 0.0
  %554 = vmatprep.subr.mxu0 0.0
  %555 = vmatpush1.msra.mxu0 0.0
  %556 = vmatprep.subr.mxu0 0.0
  %557 = vmatpush1.msra.mxu0 0.0
  %558 = vmatprep.subr.mxu0 0.0
  %559 = vmatpush1.msra.mxu0 0.0
  %560 = vmatprep.subr.mxu0 0.0
  %561 = vmatpush1.msra.mxu0 0.0
  %562 = vmatprep.subr.mxu0 0.0
  %563 = vmatpush1.msra.mxu0 0.0
  %564 = vmatprep.subr.mxu0 0.0
  %565 = vmatpush1.msra.mxu0 0.0
  %566 = vmatprep.mubr.f32.mxu0 0.0
  %567 = vmatmul.mubr.f32.gmra.mrb[0].mxu0 %v238
  %v568 = vpop.f32.mrb[0].mxu0
  %v569 = vadd.f32 0.0, %v568
  %v570 = vpop.f32.mrb[0].mxu0
  %v571 = vadd.f32 0.0, %v570
  %572 = vdwg.mxu0
  %573 = vmatprep.subr.mxu0 %v21
  %574 = vmatpush1.msra.mxu0 %v20
  %575 = vmatprep.subr.mxu0 %v37
  %576 = vmatpush1.msra.mxu0 %v36
  %577 = vmatprep.subr.mxu0 %v53
  %578 = vmatpush1.msra.mxu0 %v52
  %579 = vmatprep.subr.mxu0 %v69
  %580 = vmatpush1.msra.mxu0 %v68
  %581 = vmatprep.subr.mxu0 %v85
  %582 = vmatpush1.msra.mxu0 %v84
  %583 = vmatprep.subr.mxu0 %v101
  %584 = vmatpush1.msra.mxu0 %v100
  %585 = vmatprep.subr.mxu0 %v117
  %586 = vmatpush1.msra.mxu0 %v116
  %587 = vmatprep.subr.mxu0 %v133
  %588 = vmatpush1.msra.mxu0 %v132
  %589 = vmatprep.subr.mxu0 %v149
  %590 = vmatpush1.msra.mxu0 %v148
  %591 = vmatprep.subr.mxu0 %v165
  %592 = vmatpush1.msra.mxu0 %v164
  %593 = vmatprep.subr.mxu0 %v181
  %594 = vmatpush1.msra.mxu0 %v180
  %595 = vmatprep.subr.mxu0 %v197
  %596 = vmatpush1.msra.mxu0 %v196
  %597 = vmatprep.subr.mxu0 %v213
  %598 = vmatpush1.msra.mxu0 %v212
  %599 = vmatprep.subr.mxu0 %v269
  %600 = vmatpush1.msra.mxu0 %v266
  %601 = vmatprep.subr.mxu0 0.0
  %602 = vmatpush1.msra.mxu0 0.0
  %603 = vmatprep.subr.mxu0 0.0
  %604 = vmatpush1.msra.mxu0 0.0
  %605 = vmatprep.subr.mxu0 0.0
  %606 = vmatpush1.msra.mxu0 0.0
  %607 = vmatprep.subr.mxu0 0.0
  %608 = vmatpush1.msra.mxu0 0.0
  %609 = vmatprep.subr.mxu0 0.0
  %610 = vmatpush1.msra.mxu0 0.0
  %611 = vmatprep.subr.mxu0 0.0
  %612 = vmatpush1.msra.mxu0 0.0
  %613 = vmatprep.subr.mxu0 0.0
  %614 = vmatpush1.msra.mxu0 0.0
  %615 = vmatprep.subr.mxu0 0.0
  %616 = vmatpush1.msra.mxu0 0.0
  %617 = vmatprep.subr.mxu0 0.0
  %618 = vmatpush1.msra.mxu0 0.0
  %619 = vmatprep.subr.mxu0 0.0
  %620 = vmatpush1.msra.mxu0 0.0
  %621 = vmatprep.subr.mxu0 0.0
  %622 = vmatpush1.msra.mxu0 0.0
  %623 = vmatprep.subr.mxu0 0.0
  %624 = vmatpush1.msra.mxu0 0.0
  %625 = vmatprep.subr.mxu0 0.0
  %626 = vmatpush1.msra.mxu0 0.0
  %627 = vmatprep.subr.mxu0 0.0
  %628 = vmatpush1.msra.mxu0 0.0
  %629 = vmatprep.subr.mxu0 0.0
  %630 = vmatpush1.msra.mxu0 0.0
  %631 = vmatprep.subr.mxu0 0.0
  %632 = vmatpush1.msra.mxu0 0.0
  %633 = vmatprep.subr.mxu0 0.0
  %634 = vmatpush1.msra.mxu0 0.0
  %635 = vmatprep.subr.mxu0 0.0
  %636 = vmatpush1.msra.mxu0 0.0
  %637 = vmatprep.mubr.f32.mxu0 0.0
  %638 = vmatmul.mubr.f32.gmra.mrb[0].mxu0 %v238
  %v639 = vpop.f32.mrb[0].mxu0
  %v640 = vadd.f32 0.0, %v639
  %v641 = vpop.f32.mrb[0].mxu0
  %v642 = vadd.f32 0.0, %v641
  %643 = vdwg.mxu0
  %644 = vmatprep.subr.mxu0 %v23
  %645 = vmatpush1.msra.mxu0 %v22
  %646 = vmatprep.subr.mxu0 %v39
  %647 = vmatpush1.msra.mxu0 %v38
  %648 = vmatprep.subr.mxu0 %v55
  %649 = vmatpush1.msra.mxu0 %v54
  %650 = vmatprep.subr.mxu0 %v71
  %651 = vmatpush1.msra.mxu0 %v70
  %652 = vmatprep.subr.mxu0 %v87
  %653 = vmatpush1.msra.mxu0 %v86
  %654 = vmatprep.subr.mxu0 %v103
  %655 = vmatpush1.msra.mxu0 %v102
  %656 = vmatprep.subr.mxu0 %v119
  %657 = vmatpush1.msra.mxu0 %v118
  %658 = vmatprep.subr.mxu0 %v135
  %659 = vmatpush1.msra.mxu0 %v134
  %660 = vmatprep.subr.mxu0 %v151
  %661 = vmatpush1.msra.mxu0 %v150
  %662 = vmatprep.subr.mxu0 %v167
  %663 = vmatpush1.msra.mxu0 %v166
  %664 = vmatprep.subr.mxu0 %v183
  %665 = vmatpush1.msra.mxu0 %v182
  %666 = vmatprep.subr.mxu0 %v199
  %667 = vmatpush1.msra.mxu0 %v198
  %668 = vmatprep.subr.mxu0 %v215
  %669 = vmatpush1.msra.mxu0 %v214
  %670 = vmatprep.subr.mxu0 %v275
  %671 = vmatpush1.msra.mxu0 %v272
  %672 = vmatprep.subr.mxu0 0.0
  %673 = vmatpush1.msra.mxu0 0.0
  %674 = vmatprep.subr.mxu0 0.0
  %675 = vmatpush1.msra.mxu0 0.0
  %676 = vmatprep.subr.mxu0 0.0
  %677 = vmatpush1.msra.mxu0 0.0
  %678 = vmatprep.subr.mxu0 0.0
  %679 = vmatpush1.msra.mxu0 0.0
  %680 = vmatprep.subr.mxu0 0.0
  %681 = vmatpush1.msra.mxu0 0.0
  %682 = vmatprep.subr.mxu0 0.0
  %683 = vmatpush1.msra.mxu0 0.0
  %684 = vmatprep.subr.mxu0 0.0
  %685 = vmatpush1.msra.mxu0 0.0
  %686 = vmatprep.subr.mxu0 0.0
  %687 = vmatpush1.msra.mxu0 0.0
  %688 = vmatprep.subr.mxu0 0.0
  %689 = vmatpush1.msra.mxu0 0.0
  %690 = vmatprep.subr.mxu0 0.0
  %691 = vmatpush1.msra.mxu0 0.0
  %692 = vmatprep.subr.mxu0 0.0
  %693 = vmatpush1.msra.mxu0 0.0
  %694 = vmatprep.subr.mxu0 0.0
  %695 = vmatpush1.msra.mxu0 0.0
  %696 = vmatprep.subr.mxu0 0.0
  %697 = vmatpush1.msra.mxu0 0.0
  %698 = vmatprep.subr.mxu0 0.0
  %699 = vmatpush1.msra.mxu0 0.0
  %700 = vmatprep.subr.mxu0 0.0
  %701 = vmatpush1.msra.mxu0 0.0
  %702 = vmatprep.subr.mxu0 0.0
  %703 = vmatpush1.msra.mxu0 0.0
  %704 = vmatprep.subr.mxu0 0.0
  %705 = vmatpush1.msra.mxu0 0.0
  %706 = vmatprep.subr.mxu0 0.0
  %707 = vmatpush1.msra.mxu0 0.0
  %708 = vmatprep.mubr.f32.mxu0 0.0
  %709 = vmatmul.mubr.f32.gmra.mrb[0].mxu0 %v238
  %v710 = vpop.f32.mrb[0].mxu0
  %v711 = vadd.f32 0.0, %v710
  %v712 = vpop.f32.mrb[0].mxu0
  %v713 = vadd.f32 0.0, %v712
  %714 = vdwg.mxu0
  %715 = vmatprep.subr.mxu0 %v25
  %716 = vmatpush1.msra.mxu0 %v24
  %717 = vmatprep.subr.mxu0 %v41
  %718 = vmatpush1.msra.mxu0 %v40
  %719 = vmatprep.subr.mxu0 %v57
  %720 = vmatpush1.msra.mxu0 %v56
  %721 = vmatprep.subr.mxu0 %v73
  %722 = vmatpush1.msra.mxu0 %v72
  %723 = vmatprep.subr.mxu0 %v89
  %724 = vmatpush1.msra.mxu0 %v88
  %725 = vmatprep.subr.mxu0 %v105
  %726 = vmatpush1.msra.mxu0 %v104
  %727 = vmatprep.subr.mxu0 %v121
  %728 = vmatpush1.msra.mxu0 %v120
  %729 = vmatprep.subr.mxu0 %v137
  %730 = vmatpush1.msra.mxu0 %v136
  %731 = vmatprep.subr.mxu0 %v153
  %732 = vmatpush1.msra.mxu0 %v152
  %733 = vmatprep.subr.mxu0 %v169
  %734 = vmatpush1.msra.mxu0 %v168
  %735 = vmatprep.subr.mxu0 %v185
  %736 = vmatpush1.msra.mxu0 %v184
  %737 = vmatprep.subr.mxu0 %v201
  %738 = vmatpush1.msra.mxu0 %v200
  %739 = vmatprep.subr.mxu0 %v217
  %740 = vmatpush1.msra.mxu0 %v216
  %741 = vmatprep.subr.mxu0 %v281
  %742 = vmatpush1.msra.mxu0 %v278
  %743 = vmatprep.subr.mxu0 0.0
  %744 = vmatpush1.msra.mxu0 0.0
  %745 = vmatprep.subr.mxu0 0.0
  %746 = vmatpush1.msra.mxu0 0.0
  %747 = vmatprep.subr.mxu0 0.0
  %748 = vmatpush1.msra.mxu0 0.0
  %749 = vmatprep.subr.mxu0 0.0
  %750 = vmatpush1.msra.mxu0 0.0
  %751 = vmatprep.subr.mxu0 0.0
  %752 = vmatpush1.msra.mxu0 0.0
  %753 = vmatprep.subr.mxu0 0.0
  %754 = vmatpush1.msra.mxu0 0.0
  %755 = vmatprep.subr.mxu0 0.0
  %756 = vmatpush1.msra.mxu0 0.0
  %757 = vmatprep.subr.mxu0 0.0
  %758 = vmatpush1.msra.mxu0 0.0
  %759 = vmatprep.subr.mxu0 0.0
  %760 = vmatpush1.msra.mxu0 0.0
  %761 = vmatprep.subr.mxu0 0.0
  %762 = vmatpush1.msra.mxu0 0.0
  %763 = vmatprep.subr.mxu0 0.0
  %764 = vmatpush1.msra.mxu0 0.0
  %765 = vmatprep.subr.mxu0 0.0
  %766 = vmatpush1.msra.mxu0 0.0
  %767 = vmatprep.subr.mxu0 0.0
  %768 = vmatpush1.msra.mxu0 0.0
  %769 = vmatprep.subr.mxu0 0.0
  %770 = vmatpush1.msra.mxu0 0.0
  %771 = vmatprep.subr.mxu0 0.0
  %772 = vmatpush1.msra.mxu0 0.0
  %773 = vmatprep.subr.mxu0 0.0
  %774 = vmatpush1.msra.mxu0 0.0
  %775 = vmatprep.subr.mxu0 0.0
  %776 = vmatpush1.msra.mxu0 0.0
  %777 = vmatprep.subr.mxu0 0.0
  %778 = vmatpush1.msra.mxu0 0.0
  %779 = vmatprep.mubr.f32.mxu0 0.0
  %780 = vmatmul.mubr.f32.gmra.mrb[0].mxu0 %v238
  %v781 = vpop.f32.mrb[0].mxu0
  %v782 = vadd.f32 0.0, %v781
  %v783 = vpop.f32.mrb[0].mxu0
  %v784 = vadd.f32 0.0, %v783
  %785 = vdwg.mxu0
  %786 = vmatprep.subr.mxu0 %v27
  %787 = vmatpush1.msra.mxu0 %v26
  %788 = vmatprep.subr.mxu0 %v43
  %789 = vmatpush1.msra.mxu0 %v42
  %790 = vmatprep.subr.mxu0 %v59
  %791 = vmatpush1.msra.mxu0 %v58
  %792 = vmatprep.subr.mxu0 %v75
  %793 = vmatpush1.msra.mxu0 %v74
  %794 = vmatprep.subr.mxu0 %v91
  %795 = vmatpush1.msra.mxu0 %v90
  %796 = vmatprep.subr.mxu0 %v107
  %797 = vmatpush1.msra.mxu0 %v106
  %798 = vmatprep.subr.mxu0 %v123
  %799 = vmatpush1.msra.mxu0 %v122
  %800 = vmatprep.subr.mxu0 %v139
  %801 = vmatpush1.msra.mxu0 %v138
  %802 = vmatprep.subr.mxu0 %v155
  %803 = vmatpush1.msra.mxu0 %v154
  %804 = vmatprep.subr.mxu0 %v171
  %805 = vmatpush1.msra.mxu0 %v170
  %806 = vmatprep.subr.mxu0 %v187
  %807 = vmatpush1.msra.mxu0 %v186
  %808 = vmatprep.subr.mxu0 %v203
  %809 = vmatpush1.msra.mxu0 %v202
  %810 = vmatprep.subr.mxu0 %v219
  %811 = vmatpush1.msra.mxu0 %v218
  %812 = vmatprep.subr.mxu0 %v287
  %813 = vmatpush1.msra.mxu0 %v284
  %814 = vmatprep.subr.mxu0 0.0
  %815 = vmatpush1.msra.mxu0 0.0
  %816 = vmatprep.subr.mxu0 0.0
  %817 = vmatpush1.msra.mxu0 0.0
  %818 = vmatprep.subr.mxu0 0.0
  %819 = vmatpush1.msra.mxu0 0.0
  %820 = vmatprep.subr.mxu0 0.0
  %821 = vmatpush1.msra.mxu0 0.0
  %822 = vmatprep.subr.mxu0 0.0
  %823 = vmatpush1.msra.mxu0 0.0
  %824 = vmatprep.subr.mxu0 0.0
  %825 = vmatpush1.msra.mxu0 0.0
  %826 = vmatprep.subr.mxu0 0.0
  %827 = vmatpush1.msra.mxu0 0.0
  %828 = vmatprep.subr.mxu0 0.0
  %829 = vmatpush1.msra.mxu0 0.0
  %830 = vmatprep.subr.mxu0 0.0
  %831 = vmatpush1.msra.mxu0 0.0
  %832 = vmatprep.subr.mxu0 0.0
  %833 = vmatpush1.msra.mxu0 0.0
  %834 = vmatprep.subr.mxu0 0.0
  %835 = vmatpush1.msra.mxu0 0.0
  %836 = vmatprep.subr.mxu0 0.0
  %837 = vmatpush1.msra.mxu0 0.0
  %838 = vmatprep.subr.mxu0 0.0
  %839 = vmatpush1.msra.mxu0 0.0
  %840 = vmatprep.subr.mxu0 0.0
  %841 = vmatpush1.msra.mxu0 0.0
  %842 = vmatprep.subr.mxu0 0.0
  %843 = vmatpush1.msra.mxu0 0.0
  %844 = vmatprep.subr.mxu0 0.0
  %845 = vmatpush1.msra.mxu0 0.0
  %846 = vmatprep.subr.mxu0 0.0
  %847 = vmatpush1.msra.mxu0 0.0
  %848 = vmatprep.subr.mxu0 0.0
  %849 = vmatpush1.msra.mxu0 0.0
  %850 = vmatprep.mubr.f32.mxu0 0.0
  %851 = vmatmul.mubr.f32.gmra.mrb[0].mxu0 %v238
  %v852 = vpop.f32.mrb[0].mxu0
  %v853 = vadd.f32 0.0, %v852
  %v854 = vpop.f32.mrb[0].mxu0
  %v855 = vadd.f32 0.0, %v854
  %856 = vdwg.mxu0
  %v873 = vcombine.low %v356, %v358
  %v874 = vcombine.low %v427, %v429
  %v876 = vunpack.c.l.s4 1983009808
  %v877 = vunpack.c.0.s8 %v876
  %v878 = vlaneseq
  %v879 = vshrl.u32 %v878, 7
  %v880 = vsub.s32 %v877, %v879
  %v881 = vrot.slane %v873, %v880
  %v883 = vunpack.c.l.s4 1983009808
  %v884 = vunpack.c.0.s8 %v883
  %v885 = vlaneseq
  %v886 = vshrl.u32 %v885, 7
  %v887 = vsub.s32 %v884, %v886
  %v888 = vrot.slane %v874, %v887
  %v889 = vcombine.low %v881, %v888
  %v890 = vcombine.low %v498, %v500
  %v891 = vcombine.low %v569, %v571
  %v893 = vunpack.c.l.s4 1983009808
  %v894 = vunpack.c.0.s8 %v893
  %v895 = vlaneseq
  %v896 = vshrl.u32 %v895, 7
  %v897 = vsub.s32 %v894, %v896
  %v898 = vrot.slane %v890, %v897
  %v900 = vunpack.c.l.s4 1983009808
  %v901 = vunpack.c.0.s8 %v900
  %v902 = vlaneseq
  %v903 = vshrl.u32 %v902, 7
  %v904 = vsub.s32 %v901, %v903
  %v905 = vrot.slane %v891, %v904
  %v906 = vcombine.low %v898, %v905
  %v907 = vcombine.low %v640, %v642
  %v908 = vcombine.low %v711, %v713
  %v910 = vunpack.c.l.s4 1983009808
  %v911 = vunpack.c.0.s8 %v910
  %v912 = vlaneseq
  %v913 = vshrl.u32 %v912, 7
  %v914 = vsub.s32 %v911, %v913
  %v915 = vrot.slane %v907, %v914
  %v917 = vunpack.c.l.s4 1983009808
  %v918 = vunpack.c.0.s8 %v917
  %v919 = vlaneseq
  %v920 = vshrl.u32 %v919, 7
  %v921 = vsub.s32 %v918, %v920
  %v922 = vrot.slane %v908, %v921
  %v923 = vcombine.low %v915, %v922
  %v924 = vcombine.low %v782, %v784
  %v925 = vcombine.low %v853, %v855
  %v927 = vunpack.c.l.s4 1983009808
  %v928 = vunpack.c.0.s8 %v927
  %v929 = vlaneseq
  %v930 = vshrl.u32 %v929, 7
  %v931 = vsub.s32 %v928, %v930
  %v932 = vrot.slane %v924, %v931
  %v934 = vunpack.c.l.s4 1983009808
  %v935 = vunpack.c.0.s8 %v934
  %v936 = vlaneseq
  %v937 = vshrl.u32 %v936, 7
  %v938 = vsub.s32 %v935, %v937
  %v939 = vrot.slane %v925, %v938
  %v940 = vcombine.low %v932, %v939
  %945 = vst [vmem:[%s2] sm:$0xff] %v889
  %946 = vst [vmem:[%s2 + $0x8] sm:$0xff] %v906
  %947 = vst [vmem:[%s2 + $0x10] sm:$0xff] %v923
  %948 = vst [vmem:[%s2 + $0x18] sm:$0xff] %v940
  // Predicated region
  $region10: #{_lambda_.5} parent=0 // pred_check
    _
  $region11: #{_lambda_.5} parent=0 // pred_check_branch
    %950 = sbr.rel (0) target = $region13
  $region12: #{_lambda_.5} parent=0 // pred_region
    _
  $region13: #{_lambda_.5} parent=0 // pred_fallthru
    _
  // Predicated region
  $region14: #{_lambda_.5} parent=0 // pred_check
    _
  $region15: #{_lambda_.5} parent=0 // pred_check_branch
    %952 = sbr.rel (0) target = $region17
  $region16: #{_lambda_.5} parent=0 // pred_region
    _
  $region17: #{_lambda_.5} parent=0 // pred_fallthru
    _

</llo_original>
